<compile_context>
chip_gen: v6e
topology: v6e:2x2x1
jax: 0.10.0
libtpu: 0.0.40
codegen_flags: <defaults>
</compile_context>

<pallas_src>
import functools

import jax
import jax.numpy as jnp
from jax.experimental import pallas as pl
from jax.experimental.pallas import tpu as pltpu


def _res2_kernel(x_ref, w_ref, g_ref, b_ref, out_ref, sp_ref, *, nums, eps):
    """One grid step == one channel group (last step = pass-through copy).

    x_ref  : (N, W, L)     this group's input split, native dtype
    w_ref  : (nums, W, W)  all 1x1-conv weights (VMEM resident)
    g_ref  : (nums, W, 1)  all BN gammas (VMEM resident)
    b_ref  : (nums, W, 1)  all BN betas  (VMEM resident)
    out_ref: (N, W, L)     this group's output channels
    sp_ref : (N, W, L)     VMEM scratch carrying the group chain across steps
    """
    i = pl.program_id(0)
    n_batch, width, length = x_ref.shape

    # sp = spx[0] for the first group, sp_prev + spx[i] afterwards.
    @pl.when(i == 0)
    def _():
        sp_ref[...] = x_ref[...]

    @pl.when(jnp.logical_and(i > 0, i < nums))
    def _():
        sp_ref[...] = sp_ref[...] + x_ref[...]

    @pl.when(i < nums)
    def _():
        idx = jnp.minimum(i, nums - 1)          # clamp (branch-guarded, cheap)
        w = w_ref[idx]                          # (W, W), native dtype -> MXU

        # Conv1d(kernel_size=1, bias=False) == per-batch channel matmul with
        # f32 accumulation; BN stats accumulated in the same traversal.
        sum_r = jnp.zeros((width, 1), jnp.float32)
        sum_r2 = jnp.zeros((width, 1), jnp.float32)
        r_all = []
        for n in range(n_batch):                # static unroll over small N
            conv = jnp.dot(w, sp_ref[n],
                           preferred_element_type=jnp.float32,
                           precision=jax.lax.Precision.HIGHEST)
            r = jnp.maximum(conv, 0.0)          # ReLU, (W, L) f32
            r_all.append(r)
            sum_r = sum_r + jnp.sum(r, axis=1, keepdims=True)
            sum_r2 = sum_r2 + jnp.sum(r * r, axis=1, keepdims=True)

        # Training-mode BatchNorm1d: biased batch stats over (N, L).
        # TODO(synk): for very large N*L use per-L-tile partial sums.
        inv_cnt = 1.0 / (n_batch * length)
        mean = sum_r * inv_cnt                                  # (W, 1)
        var = jnp.maximum(sum_r2 * inv_cnt - mean * mean, 0.0)  # clamp >= 0
        inv_std = jax.lax.rsqrt(var + eps)
        a = inv_std * g_ref[idx].astype(jnp.float32)            # (W, 1)
        b = b_ref[idx].astype(jnp.float32) - mean * a           # (W, 1)

        y_all = [r_all[n] * a + b for n in range(n_batch)]      # folded affine
        for n in range(n_batch):
            out_ref[n] = y_all[n].astype(out_ref.dtype)

        # Feed the next group; skip the store after the last processed group.
        @pl.when(i + 1 < nums)
        def _():
            for n in range(n_batch):
                sp_ref[n] = y_all[n].astype(sp_ref.dtype)

    # Pass-through split (only reached when scale != 1): pure copy.
    @pl.when(i >= nums)
    def _():
        out_ref[...] = x_ref[...]


def res2conv1d_relu_bn(x, conv_w, bn_gamma, bn_beta, *, scale, eps=1e-5):
    """x: (N, C, L); conv_w: (nums, width, width); bn_gamma/bn_beta: (nums, width).

    Returns (N, C, L), matching Res2Conv1dReluBn.forward (training-mode BN).
    """
    n, c, l = x.shape
    assert c % scale == 0, f"{c} % {scale} != 0"
    width = c // scale
    nums = scale if scale == 1 else scale - 1
    assert conv_w.shape == (nums, width, width)
    assert bn_gamma.shape == (nums, width) and bn_beta.shape == (nums, width)

    # Sublane tiling: the channel-group dim sits on sublanes inside a block.
    itemsize = jnp.dtype(x.dtype).itemsize
    sublane_tile = {4: 8, 2: 16, 1: 32}[itemsize]
    assert width % sublane_tile == 0 or scale == 1, (
        f"width={width} must be a multiple of {sublane_tile} for {x.dtype}")
    # TODO(synk): pad the group dim to the sublane tile to lift this restriction.

    # VMEM residency: x block (2x double-buffered) + out block (2x) + chain
    # scratch (1x) + tiny resident params (estimate ignores lane padding).
    block_bytes = n * width * l * itemsize
    param_bytes = (conv_w.size + 2 * nums * width) * jnp.dtype(conv_w.dtype).itemsize
    vmem_est = 5 * block_bytes + 2 * param_bytes
    assert vmem_est <= 40 * 2**20, (
        f"~{vmem_est / 2**20:.1f} MiB of VMEM needed; add an L-tile grid axis "
        "(see TODO) before running shapes this large")
    vmem_limit = int(min(48 * 2**20, max(16 * 2**20, 2 * vmem_est)))

    kernel = functools.partial(_res2_kernel, nums=nums, eps=eps)

    return pl.pallas_call(
        kernel,
        out_shape=jax.ShapeDtypeStruct((n, c, l), x.dtype),
        grid_spec=pltpu.PrefetchScalarGridSpec(
            num_scalar_prefetch=0,
            grid=(scale,),  # nums processed groups (+1 pass-through if scale!=1)
            in_specs=[
                pl.BlockSpec((n, width, l), lambda i: (0, i, 0)),          # spx[i]
                pl.BlockSpec((nums, width, width), lambda i: (0, 0, 0)),   # W stack
                pl.BlockSpec((nums, width, 1), lambda i: (0, 0, 0)),       # gamma
                pl.BlockSpec((nums, width, 1), lambda i: (0, 0, 0)),       # beta
            ],
            out_specs=pl.BlockSpec((n, width, l), lambda i: (0, i, 0)),
            scratch_shapes=[pltpu.VMEM((n, width, l), x.dtype)],
        ),
        compiler_params=pltpu.CompilerParams(
            dimension_semantics=("arbitrary",),   # sequential group chain + BN
            vmem_limit_bytes=vmem_limit),
    )(x, conv_w,
      bn_gamma.reshape(nums, width, 1),
      bn_beta.reshape(nums, width, 1))


def _reference(x, conv_w, gamma, beta, scale, eps=1e-5):
    """Pure-JAX reimplementation of the PyTorch forward, for verification."""
    width = x.shape[1] // scale
    nums = scale if scale == 1 else scale - 1
    spx = [x[:, i * width:(i + 1) * width, :] for i in range(scale)]
    out = []
    sp = None
    for i in range(nums):
        sp = spx[i] if i == 0 else sp + spx[i]
        conv = jnp.einsum('ow,nwl->nol', conv_w[i], sp,
                          precision=jax.lax.Precision.HIGHEST)
        r = jnp.maximum(conv, 0.0)
        mean = jnp.mean(r, axis=(0, 2), keepdims=True)
        var = jnp.mean((r - mean) ** 2, axis=(0, 2), keepdims=True)
        sp = ((r - mean) / jnp.sqrt(var + eps)
              * gamma[i][None, :, None] + beta[i][None, :, None])
        out.append(sp)
    if scale != 1:
        out.append(spx[nums])
    return jnp.concatenate(out, axis=1)


if __name__ == "__main__":
    N, C, L, SCALE = 2, 32, 128, 4
    width = C // SCALE
    nums = SCALE - 1

    key = jax.random.PRNGKey(0)
    k1, k2, k3, k4 = jax.random.split(key, 4)
    x = jax.random.normal(k1, (N, C, L), jnp.float32)
    conv_w = 0.1 * jax.random.normal(k2, (nums, width, width), jnp.float32)
    bn_gamma = 1.0 + 0.1 * jax.random.normal(k3, (nums, width), jnp.float32)
    bn_beta = 0.1 * jax.random.normal(k4, (nums, width), jnp.float32)

    out = res2conv1d_relu_bn(x, conv_w, bn_gamma, bn_beta, scale=SCALE)
    out = jax.block_until_ready(out)

    ref = _reference(x, conv_w, bn_gamma, bn_beta, SCALE)
    assert out.shape == (N, C, L)
    # Tolerance accommodates MXU multi-pass f32 emulation differences between
    # the Mosaic kernel and the XLA reference; real semantic bugs are O(0.1+).
    if not jnp.allclose(out, ref, atol=2e-3, rtol=2e-3):
        max_err = float(jnp.max(jnp.abs(out - ref)))
        raise AssertionError(f"Pallas kernel does not match reference (max|d|={max_err})")
    print("KERNEL_OK")
</pallas_src>

<mosaic_0001>
module attributes {stable_mosaic.version = 11 : i64} {
  func.func @_res2_kernel(%arg0: i32, %arg1: memref<2x8x128xf32, #tpu.memory_space<vmem>>, %arg2: memref<3x8x8xf32, #tpu.memory_space<vmem>>, %arg3: memref<3x8x1xf32, #tpu.memory_space<vmem>>, %arg4: memref<3x8x1xf32, #tpu.memory_space<vmem>>, %arg5: memref<2x8x128xf32, #tpu.memory_space<vmem>>, %arg6: memref<2x8x128xf32, #tpu.memory_space<vmem>>) attributes {dimension_semantics = [#tpu.dimension_semantics<arbitrary>], iteration_bounds = array<i64: 4>, scalar_prefetch = 0 : i64, scratch_operands = 1 : i64, tpu.core_type = #tpu.core_type<tc>, window_params = [{transform_indices = @transform_0, window_bounds = array<i64: 2, 8, 128>}, {pipeline_mode = #tpu.pipeline_mode<synchronous>, transform_indices = @transform_1, window_bounds = array<i64: 3, 8, 8>}, {pipeline_mode = #tpu.pipeline_mode<synchronous>, transform_indices = @transform_2, window_bounds = array<i64: 3, 8, 1>}, {pipeline_mode = #tpu.pipeline_mode<synchronous>, transform_indices = @transform_3, window_bounds = array<i64: 3, 8, 1>}, {transform_indices = @transform_4, window_bounds = array<i64: 2, 8, 128>}]} {
    %c0_i32 = arith.constant 0 : i32
    %0 = arith.cmpi eq, %arg0, %c0_i32 : i32
    %1 = arith.extui %0 : i1 to i32
    %c0_i32_0 = arith.constant 0 : i32
    %2 = arith.cmpi ne, %1, %c0_i32_0 : i32
    scf.if %2 {
      %c0 = arith.constant 0 : index
      %c0_7 = arith.constant 0 : index
      %c0_8 = arith.constant 0 : index
      %14 = vector.load %arg1[%c0, %c0_7, %c0_8] : memref<2x8x128xf32, #tpu.memory_space<vmem>>, vector<2x8x128xf32>
      %c0_9 = arith.constant 0 : index
      %c0_10 = arith.constant 0 : index
      %c0_11 = arith.constant 0 : index
      %15 = vector.load %arg6[%c0_9, %c0_10, %c0_11] : memref<2x8x128xf32, #tpu.memory_space<vmem>>, vector<2x8x128xf32>
      tpu.vector_store %arg6[%c0_9, %c0_10, %c0_11], %14 {strides = array<i32>} : memref<2x8x128xf32, #tpu.memory_space<vmem>>, vector<2x8x128xf32>,
    } else {
    }
    %c0_i32_1 = arith.constant 0 : i32
    %3 = arith.cmpi sgt, %arg0, %c0_i32_1 : i32
    %c3_i32 = arith.constant 3 : i32
    %4 = arith.cmpi slt, %arg0, %c3_i32 : i32
    %5 = arith.andi %3, %4 : i1
    %6 = arith.extui %5 : i1 to i32
    %c0_i32_2 = arith.constant 0 : i32
    %7 = arith.cmpi ne, %6, %c0_i32_2 : i32
    scf.if %7 {
      %c0 = arith.constant 0 : index
      %c0_7 = arith.constant 0 : index
      %c0_8 = arith.constant 0 : index
      %14 = vector.load %arg6[%c0, %c0_7, %c0_8] : memref<2x8x128xf32, #tpu.memory_space<vmem>>, vector<2x8x128xf32>
      %c0_9 = arith.constant 0 : index
      %c0_10 = arith.constant 0 : index
      %c0_11 = arith.constant 0 : index
      %15 = vector.load %arg1[%c0_9, %c0_10, %c0_11] : memref<2x8x128xf32, #tpu.memory_space<vmem>>, vector<2x8x128xf32>
      %16 = arith.addf %14, %15 : vector<2x8x128xf32>
      %c0_12 = arith.constant 0 : index
      %c0_13 = arith.constant 0 : index
      %c0_14 = arith.constant 0 : index
      %17 = vector.load %arg6[%c0_12, %c0_13, %c0_14] : memref<2x8x128xf32, #tpu.memory_space<vmem>>, vector<2x8x128xf32>
      tpu.vector_store %arg6[%c0_12, %c0_13, %c0_14], %16 {strides = array<i32>} : memref<2x8x128xf32, #tpu.memory_space<vmem>>, vector<2x8x128xf32>,
    } else {
    }
    %c3_i32_3 = arith.constant 3 : i32
    %8 = arith.cmpi slt, %arg0, %c3_i32_3 : i32
    %9 = arith.extui %8 : i1 to i32
    %c0_i32_4 = arith.constant 0 : i32
    %10 = arith.cmpi ne, %9, %c0_i32_4 : i32
    scf.if %10 {
      %c2_i32 = arith.constant 2 : i32
      %14 = arith.minsi %arg0, %c2_i32 : i32
      %15 = arith.index_cast %14 : i32 to index
      %c0 = arith.constant 0 : index
      %c0_7 = arith.constant 0 : index
      %16 = vector.load %arg2[%15, %c0, %c0_7] : memref<3x8x8xf32, #tpu.memory_space<vmem>>, vector<1x8x8xf32>
      %17 = vector.shape_cast %16 : vector<1x8x8xf32> to vector<8x8xf32>
      %cst = arith.constant 0.000000e+00 : f32
      %18 = vector.broadcast %cst : f32 to vector<8x1xf32>
      %cst_8 = arith.constant 0.000000e+00 : f32
      %19 = vector.broadcast %cst_8 : f32 to vector<8x1xf32>
      %c0_9 = arith.constant 0 : index
      %c0_10 = arith.constant 0 : index
      %c0_11 = arith.constant 0 : index
      %20 = vector.load %arg6[%c0_9, %c0_10, %c0_11] : memref<2x8x128xf32, #tpu.memory_space<vmem>>, vector<1x8x128xf32>
      %21 = vector.shape_cast %20 : vector<1x8x128xf32> to vector<8x128xf32>
      %cst_12 = arith.constant dense<0.000000e+00> : vector<8x128xf32>
      %22 = tpu.matmul %17, %21, %cst_12 {dimension_numbers = #tpu.dot_dimension_numbers<[1], [0], [0], [1], [0, 0, 1, 1], [], []>, precision = #tpu.contract_precision<fp32>} : vector<8x8xf32>, vector<8x128xf32>, vector<8x128xf32> -> vector<8x128xf32>
      %cst_13 = arith.constant 0.000000e+00 : f32
      %23 = vector.broadcast %cst_13 : f32 to vector<8x128xf32>
      %24 = arith.maximumf %22, %23 : vector<8x128xf32>
      %cst_14 = arith.constant dense<0.000000e+00> : vector<8xf32>
      %25 = vector.multi_reduction <add>, %24, %cst_14 [1] : vector<8x128xf32> to vector<8xf32>
      %26 = vector.shape_cast %25 : vector<8xf32> to vector<8x1xf32>
      %27 = arith.addf %18, %26 : vector<8x1xf32>
      %28 = arith.mulf %24, %24 : vector<8x128xf32>
      %cst_15 = arith.constant dense<0.000000e+00> : vector<8xf32>
      %29 = vector.multi_reduction <add>, %28, %cst_15 [1] : vector<8x128xf32> to vector<8xf32>
      %30 = vector.shape_cast %29 : vector<8xf32> to vector<8x1xf32>
      %31 = arith.addf %19, %30 : vector<8x1xf32>
      %c1 = arith.constant 1 : index
      %c0_16 = arith.constant 0 : index
      %c0_17 = arith.constant 0 : index
      %32 = vector.load %arg6[%c1, %c0_16, %c0_17] : memref<2x8x128xf32, #tpu.memory_space<vmem>>, vector<1x8x128xf32>
      %33 = vector.shape_cast %32 : vector<1x8x128xf32> to vector<8x128xf32>
      %cst_18 = arith.constant dense<0.000000e+00> : vector<8x128xf32>
      %34 = tpu.matmul %17, %33, %cst_18 {dimension_numbers = #tpu.dot_dimension_numbers<[1], [0], [0], [1], [0, 0, 1, 1], [], []>, precision = #tpu.contract_precision<fp32>} : vector<8x8xf32>, vector<8x128xf32>, vector<8x128xf32> -> vector<8x128xf32>
      %cst_19 = arith.constant 0.000000e+00 : f32
      %35 = vector.broadcast %cst_19 : f32 to vector<8x128xf32>
      %36 = arith.maximumf %34, %35 : vector<8x128xf32>
      %cst_20 = arith.constant dense<0.000000e+00> : vector<8xf32>
      %37 = vector.multi_reduction <add>, %36, %cst_20 [1] : vector<8x128xf32> to vector<8xf32>
      %38 = vector.shape_cast %37 : vector<8xf32> to vector<8x1xf32>
      %39 = arith.addf %27, %38 : vector<8x1xf32>
      %40 = arith.mulf %36, %36 : vector<8x128xf32>
      %cst_21 = arith.constant dense<0.000000e+00> : vector<8xf32>
      %41 = vector.multi_reduction <add>, %40, %cst_21 [1] : vector<8x128xf32> to vector<8xf32>
      %42 = vector.shape_cast %41 : vector<8xf32> to vector<8x1xf32>
      %43 = arith.addf %31, %42 : vector<8x1xf32>
      %cst_22 = arith.constant 3.906250e-03 : f32
      %44 = vector.broadcast %cst_22 : f32 to vector<8x1xf32>
      %45 = arith.mulf %39, %44 : vector<8x1xf32>
      %cst_23 = arith.constant 3.906250e-03 : f32
      %46 = vector.broadcast %cst_23 : f32 to vector<8x1xf32>
      %47 = arith.mulf %43, %46 : vector<8x1xf32>
      %48 = arith.mulf %45, %45 : vector<8x1xf32>
      %49 = arith.subf %47, %48 : vector<8x1xf32>
      %cst_24 = arith.constant 0.000000e+00 : f32
      %50 = vector.broadcast %cst_24 : f32 to vector<8x1xf32>
      %51 = arith.maximumf %49, %50 : vector<8x1xf32>
      %cst_25 = arith.constant 9.99999974E-6 : f32
      %52 = vector.broadcast %cst_25 : f32 to vector<8x1xf32>
      %53 = arith.addf %51, %52 : vector<8x1xf32>
      %54 = math.rsqrt %53 : vector<8x1xf32>
      %55 = arith.index_cast %14 : i32 to index
      %c0_26 = arith.constant 0 : index
      %c0_27 = arith.constant 0 : index
      %56 = vector.load %arg3[%55, %c0_26, %c0_27] : memref<3x8x1xf32, #tpu.memory_space<vmem>>, vector<1x8x1xf32>
      %57 = vector.shape_cast %56 : vector<1x8x1xf32> to vector<8x1xf32>
      %58 = arith.mulf %54, %57 : vector<8x1xf32>
      %59 = arith.index_cast %14 : i32 to index
      %c0_28 = arith.constant 0 : index
      %c0_29 = arith.constant 0 : index
      %60 = vector.load %arg4[%59, %c0_28, %c0_29] : memref<3x8x1xf32, #tpu.memory_space<vmem>>, vector<1x8x1xf32>
      %61 = vector.shape_cast %60 : vector<1x8x1xf32> to vector<8x1xf32>
      %62 = arith.mulf %45, %58 : vector<8x1xf32>
      %63 = arith.subf %61, %62 : vector<8x1xf32>
      %64 = vector.broadcast %58 : vector<8x1xf32> to vector<8x128xf32>
      %65 = arith.mulf %24, %64 : vector<8x128xf32>
      %66 = vector.broadcast %63 : vector<8x1xf32> to vector<8x128xf32>
      %67 = arith.addf %65, %66 : vector<8x128xf32>
      %68 = vector.broadcast %58 : vector<8x1xf32> to vector<8x128xf32>
      %69 = arith.mulf %36, %68 : vector<8x128xf32>
      %70 = vector.broadcast %63 : vector<8x1xf32> to vector<8x128xf32>
      %71 = arith.addf %69, %70 : vector<8x128xf32>
      %c0_30 = arith.constant 0 : index
      %c0_31 = arith.constant 0 : index
      %c0_32 = arith.constant 0 : index
      %72 = vector.load %arg5[%c0_30, %c0_31, %c0_32] : memref<2x8x128xf32, #tpu.memory_space<vmem>>, vector<1x8x128xf32>
      %73 = vector.shape_cast %72 : vector<1x8x128xf32> to vector<8x128xf32>
      %74 = vector.shape_cast %67 : vector<8x128xf32> to vector<1x8x128xf32>
      tpu.vector_store %arg5[%c0_30, %c0_31, %c0_32], %74 {strides = array<i32>} : memref<2x8x128xf32, #tpu.memory_space<vmem>>, vector<1x8x128xf32>,
      %c1_33 = arith.constant 1 : index
      %c0_34 = arith.constant 0 : index
      %c0_35 = arith.constant 0 : index
      %75 = vector.load %arg5[%c1_33, %c0_34, %c0_35] : memref<2x8x128xf32, #tpu.memory_space<vmem>>, vector<1x8x128xf32>
      %76 = vector.shape_cast %75 : vector<1x8x128xf32> to vector<8x128xf32>
      %77 = vector.shape_cast %71 : vector<8x128xf32> to vector<1x8x128xf32>
      tpu.vector_store %arg5[%c1_33, %c0_34, %c0_35], %77 {strides = array<i32>} : memref<2x8x128xf32, #tpu.memory_space<vmem>>, vector<1x8x128xf32>,
      %c1_i32 = arith.constant 1 : i32
      %78 = arith.addi %arg0, %c1_i32 : i32
      %c3_i32_36 = arith.constant 3 : i32
      %79 = arith.cmpi slt, %78, %c3_i32_36 : i32
      %80 = arith.extui %79 : i1 to i32
      %c0_i32_37 = arith.constant 0 : i32
      %81 = arith.cmpi ne, %80, %c0_i32_37 : i32
      scf.if %81 {
        %c0_38 = arith.constant 0 : index
        %c0_39 = arith.constant 0 : index
        %c0_40 = arith.constant 0 : index
        %82 = vector.load %arg6[%c0_38, %c0_39, %c0_40] : memref<2x8x128xf32, #tpu.memory_space<vmem>>, vector<1x8x128xf32>
        %83 = vector.shape_cast %82 : vector<1x8x128xf32> to vector<8x128xf32>
        %84 = vector.shape_cast %67 : vector<8x128xf32> to vector<1x8x128xf32>
        tpu.vector_store %arg6[%c0_38, %c0_39, %c0_40], %84 {strides = array<i32>} : memref<2x8x128xf32, #tpu.memory_space<vmem>>, vector<1x8x128xf32>,
        %c1_41 = arith.constant 1 : index
        %c0_42 = arith.constant 0 : index
        %c0_43 = arith.constant 0 : index
        %85 = vector.load %arg6[%c1_41, %c0_42, %c0_43] : memref<2x8x128xf32, #tpu.memory_space<vmem>>, vector<1x8x128xf32>
        %86 = vector.shape_cast %85 : vector<1x8x128xf32> to vector<8x128xf32>
        %87 = vector.shape_cast %71 : vector<8x128xf32> to vector<1x8x128xf32>
        tpu.vector_store %arg6[%c1_41, %c0_42, %c0_43], %87 {strides = array<i32>} : memref<2x8x128xf32, #tpu.memory_space<vmem>>, vector<1x8x128xf32>,
      } else {
      }
    } else {
    }
    %c3_i32_5 = arith.constant 3 : i32
    %11 = arith.cmpi sge, %arg0, %c3_i32_5 : i32
    %12 = arith.extui %11 : i1 to i32
    %c0_i32_6 = arith.constant 0 : i32
    %13 = arith.cmpi ne, %12, %c0_i32_6 : i32
    scf.if %13 {
      %c0 = arith.constant 0 : index
      %c0_7 = arith.constant 0 : index
      %c0_8 = arith.constant 0 : index
      %14 = vector.load %arg1[%c0, %c0_7, %c0_8] : memref<2x8x128xf32, #tpu.memory_space<vmem>>, vector<2x8x128xf32>
      %c0_9 = arith.constant 0 : index
      %c0_10 = arith.constant 0 : index
      %c0_11 = arith.constant 0 : index
      %15 = vector.load %arg5[%c0_9, %c0_10, %c0_11] : memref<2x8x128xf32, #tpu.memory_space<vmem>>, vector<2x8x128xf32>
      tpu.vector_store %arg5[%c0_9, %c0_10, %c0_11], %14 {strides = array<i32>} : memref<2x8x128xf32, #tpu.memory_space<vmem>>, vector<2x8x128xf32>,
    } else {
    }
    return
  }
  func.func @transform_0(%arg0: i32) -> (i32, i32, i32) {
    %c0_i32 = arith.constant 0 : i32
    %c0_i32_0 = arith.constant 0 : i32
    %c0_i32_1 = arith.constant 0 : i32
    return %c0_i32, %arg0, %c0_i32_0 : i32, i32, i32
  }
  func.func @transform_1(%arg0: i32) -> (i32, i32, i32) {
    %c0_i32 = arith.constant 0 : i32
    %c0_i32_0 = arith.constant 0 : i32
    %c0_i32_1 = arith.constant 0 : i32
    %c0_i32_2 = arith.constant 0 : i32
    return %c0_i32, %c0_i32_0, %c0_i32_1 : i32, i32, i32
  }
  func.func @transform_2(%arg0: i32) -> (i32, i32, i32) {
    %c0_i32 = arith.constant 0 : i32
    %c0_i32_0 = arith.constant 0 : i32
    %c0_i32_1 = arith.constant 0 : i32
    %c0_i32_2 = arith.constant 0 : i32
    return %c0_i32, %c0_i32_0, %c0_i32_1 : i32, i32, i32
  }
  func.func @transform_3(%arg0: i32) -> (i32, i32, i32) {
    %c0_i32 = arith.constant 0 : i32
    %c0_i32_0 = arith.constant 0 : i32
    %c0_i32_1 = arith.constant 0 : i32
    %c0_i32_2 = arith.constant 0 : i32
    return %c0_i32, %c0_i32_0, %c0_i32_1 : i32, i32, i32
  }
  func.func @transform_4(%arg0: i32) -> (i32, i32, i32) {
    %c0_i32 = arith.constant 0 : i32
    %c0_i32_0 = arith.constant 0 : i32
    %c0_i32_1 = arith.constant 0 : i32
    return %c0_i32, %arg0, %c0_i32_0 : i32, i32, i32
  }
}

</mosaic_0001>

<llo_original>
// kernel: tpu_custom_call.1
$region0: #{tpu_custom_call.1}
  #allocation0 [shape = 'u32[]', space=smem, size = 0x4, offset = 0x4, fixed_abs, tag = 'smem constant byte address 0x4 - core index']
  #allocation1 [shape = 'u32[144,128]{1,0:T(1,128)}', space=vmem, size = 0x12000, scoped, tag = 'internal scratch']
  #allocation2 [shape = 'f32[2,8,128]{2,1,0:T(8,128)}', space=vmem, size = 0x2000, scoped, tag = 'scratch operand']
  %s0 = inlined_call_operand.hbm [shape: f32[2,32,128], index: 0, kind: input, shape index: {}]
  %s1 = inlined_call_operand.vmem [shape: f32[3,8,8], index: 1, kind: input, shape index: {}]
  %s2 = inlined_call_operand.vmem [shape: f32[3,8,1], index: 2, kind: input, shape index: {}]
  %s3 = inlined_call_operand.vmem [shape: f32[3,8,1], index: 3, kind: input, shape index: {}]
  %s4 = inlined_call_operand.hbm [shape: f32[2,32,128], index: 4, kind: output, shape index: {}]
  %s5 = sld [smem:[#allocation0]]
  $region73: #{tpu_custom_call.1} parent=0
    _
  %s7 = ssub.s32 1, %s5
  %s8 = scalar_select 0, %s7, %s5
  $region1: #{tpu_custom_call.1} parent=0
    #allocation3 [shape = 'u8[16384]{0}', space=vmem, size = 0x4000, scoped, tag = 'input window, operand 0']
    #allocation4 [shape = 's32[2]{0}', space=sflag, size = 0x8, scoped, tag = 'scoped memory for tpu_custom_call.1']
    #allocation5 [shape = 's32[2]{0}', space=sflag, size = 0x8, scoped, tag = 'scoped memory for tpu_custom_call.1']
    #allocation6 [shape = 'u8[16384]{0}', space=vmem, size = 0x4000, scoped, tag = 'output window, operand 0']
    %9 = vsyncpa [#allocation4], 0
    %s10 = scalar_lea.sflag [#allocation4], 1
    %11 = vsyncpa %s10, 0
    %12 = vsyncpa [#allocation5], 0
    %s13 = scalar_lea.sflag [#allocation5], 1
    %14 = vsyncpa %s13, 0
    loop: start=0, step=1, limit=6
    $region2: #{tpu_custom_call.1} parent=1 // loop_pre_header
      _
    $region3: #{tpu_custom_call.1} parent=1 // loop_header
      %s16 = sphi 0, %s20
      %p17 = scmp.ge.s32.totalorder %s16, 6
      %s26 = sphi 0, %s28
      %s29 = sphi 0, %s26
      %s30 = sphi 0, %s29
      %s46 = sphi 0, %s30
      %s50 = sphi 0, %s50
      %s52 = sphi 0, %s50
      %s53 = sphi 0, %s52
      %s67 = sphi 0, %s53
      %s71 = sphi 0, %s71
      %s73 = sphi 0, %s71
      %s74 = sphi 0, %s73
      %s88 = sphi 0, %s74
      %s92 = sphi 0, %s92
      %s94 = sphi 0, %s92
      %s95 = sphi 0, %s94
      %s109 = sphi 0, %s95
      %s115 = sphi 0, %s117
      %s118 = sphi 0, %s115
      %s119 = sphi 0, %s118
      %s135 = sphi 0, %s119
    $region4: #{tpu_custom_call.1} parent=1 // loop_header_branch
      %19 = sbr.rel (%p17) target = $region8
    $region5: #{tpu_custom_call.1} parent=1 // loop_body
      %s21 = ssub.s32 %s16, 1
      %s22 = ssub.s32 %s16, 2
      %s23 = sadd.s32 %s16, 1
      %s24 = ssub.s32 %s16, %s23
      %p25 = scmp.eq.s32.totalorder %s24, 0
      %s27 = sadd.s32 %s26, 1
      %s28 = scalar_select %p25, %s26, %s27
      %p31 = pneg %p25
      %p32 = scmp.eq.s32.totalorder %s16, 3
      %p33 = por %p31, %p32
      %p34 = scmp.ne.s32.totalorder %s26, %s29
      %p35 = scmp.eq.s32.totalorder %s16, 0
      %p36 = por %p34, %p35
      %p37 = scmp.ne.s32.totalorder %s26, %s29
      %p38 = scmp.eq.s32.totalorder %s21, 3
      %p39 = por %p37, %p38
      %p40 = scmp.ne.s32.totalorder %s29, %s30
      %p41 = scmp.eq.s32.totalorder %s21, 0
      %p42 = por %p40, %p41
      %p43 = scmp.ne.s32.totalorder %s29, %s30
      %p44 = scmp.eq.s32.totalorder %s22, 3
      %p45 = por %p43, %p44
      %p47 = scmp.ne.s32.totalorder %s30, %s46
      %p48 = scmp.eq.s32.totalorder %s22, 0
      %p49 = por %p47, %p48
      %s51 = sadd.s32 %s50, 1
      %p54 = scmp.eq.s32.totalorder %s16, 3
      %p55 = scmp.ne.s32.totalorder %s50, %s52
      %p56 = scmp.eq.s32.totalorder %s16, 0
      %p57 = por %p55, %p56
      %p58 = scmp.ne.s32.totalorder %s50, %s52
      %p59 = scmp.eq.s32.totalorder %s21, 3
      %p60 = por %p58, %p59
      %p61 = scmp.ne.s32.totalorder %s52, %s53
      %p62 = scmp.eq.s32.totalorder %s21, 0
      %p63 = por %p61, %p62
      %p64 = scmp.ne.s32.totalorder %s52, %s53
      %p65 = scmp.eq.s32.totalorder %s22, 3
      %p66 = por %p64, %p65
      %p68 = scmp.ne.s32.totalorder %s53, %s67
      %p69 = scmp.eq.s32.totalorder %s22, 0
      %p70 = por %p68, %p69
      %s72 = sadd.s32 %s71, 1
      %p75 = scmp.eq.s32.totalorder %s16, 3
      %p76 = scmp.ne.s32.totalorder %s71, %s73
      %p77 = scmp.eq.s32.totalorder %s16, 0
      %p78 = por %p76, %p77
      %p79 = scmp.ne.s32.totalorder %s71, %s73
      %p80 = scmp.eq.s32.totalorder %s21, 3
      %p81 = por %p79, %p80
      %p82 = scmp.ne.s32.totalorder %s73, %s74
      %p83 = scmp.eq.s32.totalorder %s21, 0
      %p84 = por %p82, %p83
      %p85 = scmp.ne.s32.totalorder %s73, %s74
      %p86 = scmp.eq.s32.totalorder %s22, 3
      %p87 = por %p85, %p86
      %p89 = scmp.ne.s32.totalorder %s74, %s88
      %p90 = scmp.eq.s32.totalorder %s22, 0
      %p91 = por %p89, %p90
      %s93 = sadd.s32 %s92, 1
      %p96 = scmp.eq.s32.totalorder %s16, 3
      %p97 = scmp.ne.s32.totalorder %s92, %s94
      %p98 = scmp.eq.s32.totalorder %s16, 0
      %p99 = por %p97, %p98
      %p100 = scmp.ne.s32.totalorder %s92, %s94
      %p101 = scmp.eq.s32.totalorder %s21, 3
      %p102 = por %p100, %p101
      %p103 = scmp.ne.s32.totalorder %s94, %s95
      %p104 = scmp.eq.s32.totalorder %s21, 0
      %p105 = por %p103, %p104
      %p106 = scmp.ne.s32.totalorder %s94, %s95
      %p107 = scmp.eq.s32.totalorder %s22, 3
      %p108 = por %p106, %p107
      %p110 = scmp.ne.s32.totalorder %s95, %s109
      %p111 = scmp.eq.s32.totalorder %s22, 0
      %p112 = por %p110, %p111
      %s113 = ssub.s32 %s16, %s23
      %p114 = scmp.eq.s32.totalorder %s113, 0
      %s116 = sadd.s32 %s115, 1
      %s117 = scalar_select %p114, %s115, %s116
      %p120 = pneg %p114
      %p121 = scmp.eq.s32.totalorder %s16, 3
      %p122 = por %p120, %p121
      %p123 = scmp.ne.s32.totalorder %s115, %s118
      %p124 = scmp.eq.s32.totalorder %s16, 0
      %p125 = por %p123, %p124
      %p126 = scmp.ne.s32.totalorder %s115, %s118
      %p127 = scmp.eq.s32.totalorder %s21, 3
      %p128 = por %p126, %p127
      %p129 = scmp.ne.s32.totalorder %s118, %s119
      %p130 = scmp.eq.s32.totalorder %s21, 0
      %p131 = por %p129, %p130
      %p132 = scmp.ne.s32.totalorder %s118, %s119
      %p133 = scmp.eq.s32.totalorder %s22, 3
      %p134 = por %p132, %p133
      %p136 = scmp.ne.s32.totalorder %s119, %s135
      %p137 = scmp.eq.s32.totalorder %s22, 0
      %p138 = por %p136, %p137
      %p139 = scmp.le.s32.totalorder 1, %s16
      %p140 = scmp.lt.s32.totalorder %s16, 5
      %p141 = pnand %p139, %p140
      %p142 = pneg %p141
      // Predicated region
      $region9: #{tpu_custom_call.1} parent=5 // pred_check
        _
      $region10: #{tpu_custom_call.1} parent=5 // pred_check_branch
        %144 = sbr.rel (%p141) target = $region12
      $region11: #{tpu_custom_call.1} parent=5 // pred_region
        %s145 = ssub.s32 %s16, 1
        // Predicated region
        $region13: #{tpu_custom_call.1} parent=11 // pred_check
          %p146 = pneg %p63
        $region14: #{tpu_custom_call.1} parent=11 // pred_check_branch
          %148 = sbr.rel (%p146) target = $region16
        $region15: #{tpu_custom_call.1} parent=11 // pred_region
          _
        $region16: #{tpu_custom_call.1} parent=11 // pred_fallthru
          _
        // Predicated region
        $region17: #{tpu_custom_call.1} parent=11 // pred_check
          %p149 = pneg %p84
        $region18: #{tpu_custom_call.1} parent=11 // pred_check_branch
          %151 = sbr.rel (%p149) target = $region20
        $region19: #{tpu_custom_call.1} parent=11 // pred_region
          _
        $region20: #{tpu_custom_call.1} parent=11 // pred_fallthru
          _
        // Predicated region
        $region21: #{tpu_custom_call.1} parent=11 // pred_check
          %p152 = pneg %p105
        $region22: #{tpu_custom_call.1} parent=11 // pred_check_branch
          %154 = sbr.rel (%p152) target = $region24
        $region23: #{tpu_custom_call.1} parent=11 // pred_region
          _
        $region24: #{tpu_custom_call.1} parent=11 // pred_fallthru
          _
      $region12: #{tpu_custom_call.1} parent=5 // pred_fallthru
        _
      %p155 = scmp.lt.s32.totalorder %s16, 4
      // Predicated region
      $region25: #{tpu_custom_call.1} parent=5 // pred_check
        %p156 = pneg %p155
      $region26: #{tpu_custom_call.1} parent=5 // pred_check_branch
        %158 = sbr.rel (%p156) target = $region28
      $region27: #{tpu_custom_call.1} parent=5 // pred_region
        // Predicated region
        $region29: #{tpu_custom_call.1} parent=27 // pred_check
          %p159 = pneg %p36
        $region30: #{tpu_custom_call.1} parent=27 // pred_check_branch
          %161 = sbr.rel (%p159) target = $region32
        $region31: #{tpu_custom_call.1} parent=27 // pred_region
          %s162 = sand.u32 %s26, 1
          %s163 = scalar_lea.sflag [#allocation4], %s162
          %s164 = sand.u32 %s26, 1
          %s165 = smul.addr %s164, 16
          %s166 = scalar_lea.vmem [#allocation3], %s165
          %s168 = ssub.s32 256, 256
          %169 = vsyncadd %s163, %s168
          %s170 = smul.addr %s16, 128
          %s171 = scalar_lea.hbm %s0, %s170
          %s172 = sshll.u32 %s166, 4
          %s173 = int_to_ptr.vmem [resolvable:$true] %s172
          %178 = dma.hbm_to_vmem [thread:$0]  %s171, 256, %s173, %s163, 512, 128, 8
        $region32: #{tpu_custom_call.1} parent=27 // pred_fallthru
          _
      $region28: #{tpu_custom_call.1} parent=5 // pred_fallthru
        _
      %p179 = scmp.le.s32.totalorder 1, %s16
      %p180 = scmp.lt.s32.totalorder %s16, 5
      %p181 = pnand %p179, %p180
      %p182 = pneg %p181
      // Predicated region
      $region33: #{tpu_custom_call.1} parent=5 // pred_check
        _
      $region34: #{tpu_custom_call.1} parent=5 // pred_check_branch
        %184 = sbr.rel (%p181) target = $region36
      $region35: #{tpu_custom_call.1} parent=5 // pred_region
        %s185 = ssub.s32 %s16, 1
        %s186 = sand.u32 %s29, 1
        %s187 = scalar_lea.sflag [#allocation4], %s186
        %s188 = sand.u32 %s29, 1
        %s189 = smul.addr %s188, 16
        %s190 = scalar_lea.vmem [#allocation3], %s189
        // Predicated region
        $region37: #{tpu_custom_call.1} parent=35 // pred_check
          %p191 = pneg %p42
        $region38: #{tpu_custom_call.1} parent=35 // pred_check_branch
          %193 = sbr.rel (%p191) target = $region40
        $region39: #{tpu_custom_call.1} parent=35 // pred_region
          %194 = dma.done %s187, 256
        $region40: #{tpu_custom_call.1} parent=35 // pred_fallthru
          _
        %s195 = sand.u32 %s29, 1
        %s196 = scalar_lea.sflag [#allocation4], %s195
        %s197 = sand.u32 %s29, 1
        %s198 = smul.addr %s197, 16
        %s199 = scalar_lea.vmem [#allocation3], %s198
        %p200 = pneg %p42
        %p201 = pneg %p39
        %p202 = pneg %p63
        %p203 = pneg %p60
        %p204 = pneg %p84
        %p205 = pneg %p81
        %p206 = pneg %p105
        %p207 = pneg %p102
        %p208 = pneg %p131
        %p209 = pneg %p128
        %s210 = sand.u32 %s118, 1
        %s211 = scalar_lea.sflag [#allocation5], %s210
        %s212 = sand.u32 %s118, 1
        %s213 = smul.addr %s212, 16
        %s214 = scalar_lea.vmem [#allocation6], %s213
        %p215 = scmp.eq.s32.totalorder %s21, 0
        // Predicated region
        $region41: #{tpu_custom_call.1} parent=35 // pred_check
          %p216 = pneg %p215
        $region42: #{tpu_custom_call.1} parent=35 // pred_check_branch
          %218 = sbr.rel (%p216) target = $region44
        $region43: #{tpu_custom_call.1} parent=35 // pred_region
          %v219 = vld [vmem:[%s190] sm:$0xff]
          %v220 = vld [vmem:[%s190 + $0x8] sm:$0xff]
          %221 = vst [vmem:[#allocation2] sm:$0xff] %v219
          %222 = vst [vmem:[#allocation2 + $0x8] sm:$0xff] %v220
        $region44: #{tpu_custom_call.1} parent=35 // pred_fallthru
          _
        %p223 = scmp.gt.s32.totalorder %s21, 0
        %p224 = scmp.lt.s32.totalorder %s21, 3
        %p225 = pnand %p223, %p224
        %p226 = pneg %p225
        // Predicated region
        $region45: #{tpu_custom_call.1} parent=35 // pred_check
          _
        $region46: #{tpu_custom_call.1} parent=35 // pred_check_branch
          %228 = sbr.rel (%p225) target = $region48
        $region47: #{tpu_custom_call.1} parent=35 // pred_region
          %v229 = vld [vmem:[#allocation2] sm:$0xff]
          %v230 = vld [vmem:[#allocation2 + $0x8] sm:$0xff]
          %v231 = vld [vmem:[%s190] sm:$0xff]
          %v232 = vld [vmem:[%s190 + $0x8] sm:$0xff]
          %v233 = vadd.f32 %v229, %v231
          %v234 = vadd.f32 %v230, %v232
          %235 = vst [vmem:[#allocation2] sm:$0xff] %v233
          %236 = vst [vmem:[#allocation2 + $0x8] sm:$0xff] %v234
        $region48: #{tpu_custom_call.1} parent=35 // pred_fallthru
          _
        // Predicated region
        $region49: #{tpu_custom_call.1} parent=35 // pred_check
          %p237 = pneg %p224
        $region50: #{tpu_custom_call.1} parent=35 // pred_check_branch
          %239 = sbr.rel (%p237) target = $region52
        $region51: #{tpu_custom_call.1} parent=35 // pred_region
          %p240 = scmp.lt.s32.totalorder %s21, 2
          %s241 = scalar_select %p240, %s21, 2
          %s242 = smul.u32 %s241, 8
          %s243 = scalar_lea.vmem %s1, %s242
          %v244 = vld [vmem:[%s243] sm:$0xff]
          %v245 = vld [vmem:[#allocation2] sm:$0xff]
          %vm246 = vcmask 64512
          %v248 = vsel %vm246, %v244, 0
          %250 = vmatprep.subr.mxu0 0.0
          %251 = vmatpush1.msra.mxu0 0.0
          %252 = vmatprep.subr.mxu0 0.0
          %253 = vmatpush1.msra.mxu0 0.0
          %254 = vmatprep.subr.mxu0 0.0
          %255 = vmatpush1.msra.mxu0 0.0
          %256 = vmatprep.subr.mxu0 0.0
          %257 = vmatpush1.msra.mxu0 0.0
          %258 = vmatprep.subr.mxu0 0.0
          %259 = vmatpush1.msra.mxu0 0.0
          %260 = vmatprep.subr.mxu0 0.0
          %261 = vmatpush1.msra.mxu0 0.0
          %262 = vmatprep.subr.mxu0 0.0
          %263 = vmatpush1.msra.mxu0 0.0
          %264 = vmatprep.subr.mxu0 0.0
          %265 = vmatpush1.msra.mxu0 0.0
          %266 = vmatprep.subr.mxu0 0.0
          %267 = vmatpush1.msra.mxu0 0.0
          %268 = vmatprep.subr.mxu0 0.0
          %269 = vmatpush1.msra.mxu0 0.0
          %270 = vmatprep.subr.mxu0 0.0
          %271 = vmatpush1.msra.mxu0 0.0
          %272 = vmatprep.subr.mxu0 0.0
          %273 = vmatpush1.msra.mxu0 0.0
          %274 = vmatprep.subr.mxu0 0.0
          %275 = vmatpush1.msra.mxu0 0.0
          %276 = vmatprep.subr.mxu0 0.0
          %277 = vmatpush1.msra.mxu0 0.0
          %278 = vmatprep.subr.mxu0 0.0
          %279 = vmatpush1.msra.mxu0 0.0
          %280 = vmatprep.subr.mxu0 0.0
          %v281 = vand.u32 %v245, 4294901760
          %282 = vmatpush1.msra.mxu0 %v281
          %283 = vmatprep.subr.mxu0 0.0
          %284 = vmatpush2.msra.mxu0 0.0
          %285 = vmatprep.subr.mxu0 0.0
          %286 = vmatpush2.msra.mxu0 0.0
          %287 = vmatprep.subr.mxu0 0.0
          %288 = vmatpush2.msra.mxu0 0.0
          %289 = vmatprep.subr.mxu0 0.0
          %290 = vmatpush2.msra.mxu0 0.0
          %291 = vmatprep.subr.mxu0 0.0
          %292 = vmatpush2.msra.mxu0 0.0
          %293 = vmatprep.subr.mxu0 0.0
          %294 = vmatpush2.msra.mxu0 0.0
          %295 = vmatprep.subr.mxu0 0.0
          %296 = vmatpush2.msra.mxu0 0.0
          %297 = vmatprep.subr.mxu0 0.0
          %298 = vmatpush2.msra.mxu0 0.0
          %299 = vmatprep.subr.mxu0 0.0
          %300 = vmatpush2.msra.mxu0 0.0
          %301 = vmatprep.subr.mxu0 0.0
          %302 = vmatpush2.msra.mxu0 0.0
          %303 = vmatprep.subr.mxu0 0.0
          %304 = vmatpush2.msra.mxu0 0.0
          %305 = vmatprep.subr.mxu0 0.0
          %306 = vmatpush2.msra.mxu0 0.0
          %307 = vmatprep.subr.mxu0 0.0
          %308 = vmatpush2.msra.mxu0 0.0
          %309 = vmatprep.subr.mxu0 0.0
          %310 = vmatpush2.msra.mxu0 0.0
          %311 = vmatprep.subr.mxu0 0.0
          %312 = vmatpush2.msra.mxu0 0.0
          %313 = vmatprep.subr.mxu0 0.0
          %314 = vmatpush2.msra.mxu0 0.0
          %315 = vmatprep.mubr.f32.mxu0 0.0
          %v316 = vand.u32 %v248, 4294901760
          %v317 = vsub.f32 %v248, %v316
          %v318 = vand.u32 %v317, 4294901760
          %v319 = vsub.f32 %v317, %v318
          %v320 = vand.u32 %v319, 4294901760
          %321 = vmatmul.mubr.f32.gmra.mxu0 %v320
          %v322 = vpop.f32.mrf.mxu0
          %v323 = vadd.f32 0.0, %v322
          %v324 = vpop.f32.mrf.mxu0
          %325 = vdwg.mxu0
          %326 = vmatprep.subr.mxu0 0.0
          %327 = vmatpush1.msra.mxu0 0.0
          %328 = vmatprep.subr.mxu0 0.0
          %329 = vmatpush1.msra.mxu0 0.0
          %330 = vmatprep.subr.mxu0 0.0
          %331 = vmatpush1.msra.mxu0 0.0
          %332 = vmatprep.subr.mxu0 0.0
          %333 = vmatpush1.msra.mxu0 0.0
          %334 = vmatprep.subr.mxu0 0.0
          %335 = vmatpush1.msra.mxu0 0.0
          %336 = vmatprep.subr.mxu0 0.0
          %337 = vmatpush1.msra.mxu0 0.0
          %338 = vmatprep.subr.mxu0 0.0
          %339 = vmatpush1.msra.mxu0 0.0
          %340 = vmatprep.subr.mxu0 0.0
          %341 = vmatpush1.msra.mxu0 0.0
          %342 = vmatprep.subr.mxu0 0.0
          %343 = vmatpush1.msra.mxu0 0.0
          %344 = vmatprep.subr.mxu0 0.0
          %345 = vmatpush1.msra.mxu0 0.0
          %346 = vmatprep.subr.mxu0 0.0
          %347 = vmatpush1.msra.mxu0 0.0
          %348 = vmatprep.subr.mxu0 0.0
          %349 = vmatpush1.msra.mxu0 0.0
          %350 = vmatprep.subr.mxu0 0.0
          %351 = vmatpush1.msra.mxu0 0.0
          %352 = vmatprep.subr.mxu0 0.0
          %353 = vmatpush1.msra.mxu0 0.0
          %354 = vmatprep.subr.mxu0 0.0
          %355 = vmatpush1.msra.mxu0 0.0
          %356 = vmatprep.subr.mxu0 0.0
          %v357 = vand.u32 %v245, 4294901760
          %v358 = vsub.f32 %v245, %v357
          %v359 = vand.u32 %v358, 4294901760
          %v360 = vsub.f32 %v358, %v359
          %v361 = vand.u32 %v360, 4294901760
          %362 = vmatpush1.msra.mxu0 %v361
          %363 = vmatprep.subr.mxu0 0.0
          %364 = vmatpush2.msra.mxu0 0.0
          %365 = vmatprep.subr.mxu0 0.0
          %366 = vmatpush2.msra.mxu0 0.0
          %367 = vmatprep.subr.mxu0 0.0
          %368 = vmatpush2.msra.mxu0 0.0
          %369 = vmatprep.subr.mxu0 0.0
          %370 = vmatpush2.msra.mxu0 0.0
          %371 = vmatprep.subr.mxu0 0.0
          %372 = vmatpush2.msra.mxu0 0.0
          %373 = vmatprep.subr.mxu0 0.0
          %374 = vmatpush2.msra.mxu0 0.0
          %375 = vmatprep.subr.mxu0 0.0
          %376 = vmatpush2.msra.mxu0 0.0
          %377 = vmatprep.subr.mxu0 0.0
          %378 = vmatpush2.msra.mxu0 0.0
          %379 = vmatprep.subr.mxu0 0.0
          %380 = vmatpush2.msra.mxu0 0.0
          %381 = vmatprep.subr.mxu0 0.0
          %382 = vmatpush2.msra.mxu0 0.0
          %383 = vmatprep.subr.mxu0 0.0
          %384 = vmatpush2.msra.mxu0 0.0
          %385 = vmatprep.subr.mxu0 0.0
          %386 = vmatpush2.msra.mxu0 0.0
          %387 = vmatprep.subr.mxu0 0.0
          %388 = vmatpush2.msra.mxu0 0.0
          %389 = vmatprep.subr.mxu0 0.0
          %390 = vmatpush2.msra.mxu0 0.0
          %391 = vmatprep.subr.mxu0 0.0
          %392 = vmatpush2.msra.mxu0 0.0
          %393 = vmatprep.subr.mxu0 0.0
          %394 = vmatpush2.msra.mxu0 0.0
          %395 = vmatprep.mubr.f32.mxu0 0.0
          %v396 = vand.u32 %v248, 4294901760
          %397 = vmatmul.mubr.f32.gmra.mxu0 %v396
          %v398 = vpop.f32.mrf.mxu0
          %v399 = vadd.f32 %v323, %v398
          %v400 = vpop.f32.mrf.mxu0
          %401 = vdwg.mxu0
          %402 = vmatprep.subr.mxu0 0.0
          %403 = vmatpush1.msra.mxu0 0.0
          %404 = vmatprep.subr.mxu0 0.0
          %405 = vmatpush1.msra.mxu0 0.0
          %406 = vmatprep.subr.mxu0 0.0
          %407 = vmatpush1.msra.mxu0 0.0
          %408 = vmatprep.subr.mxu0 0.0
          %409 = vmatpush1.msra.mxu0 0.0
          %410 = vmatprep.subr.mxu0 0.0
          %411 = vmatpush1.msra.mxu0 0.0
          %412 = vmatprep.subr.mxu0 0.0
          %413 = vmatpush1.msra.mxu0 0.0
          %414 = vmatprep.subr.mxu0 0.0
          %415 = vmatpush1.msra.mxu0 0.0
          %416 = vmatprep.subr.mxu0 0.0
          %417 = vmatpush1.msra.mxu0 0.0
          %418 = vmatprep.subr.mxu0 0.0
          %419 = vmatpush1.msra.mxu0 0.0
          %420 = vmatprep.subr.mxu0 0.0
          %421 = vmatpush1.msra.mxu0 0.0
          %422 = vmatprep.subr.mxu0 0.0
          %423 = vmatpush1.msra.mxu0 0.0
          %424 = vmatprep.subr.mxu0 0.0
          %425 = vmatpush1.msra.mxu0 0.0
          %426 = vmatprep.subr.mxu0 0.0
          %427 = vmatpush1.msra.mxu0 0.0
          %428 = vmatprep.subr.mxu0 0.0
          %429 = vmatpush1.msra.mxu0 0.0
          %430 = vmatprep.subr.mxu0 0.0
          %431 = vmatpush1.msra.mxu0 0.0
          %432 = vmatprep.subr.mxu0 0.0
          %v433 = vand.u32 %v245, 4294901760
          %v434 = vsub.f32 %v245, %v433
          %435 = vmatpush1.msra.mxu0 %v434
          %436 = vmatprep.subr.mxu0 0.0
          %437 = vmatpush2.msra.mxu0 0.0
          %438 = vmatprep.subr.mxu0 0.0
          %439 = vmatpush2.msra.mxu0 0.0
          %440 = vmatprep.subr.mxu0 0.0
          %441 = vmatpush2.msra.mxu0 0.0
          %442 = vmatprep.subr.mxu0 0.0
          %443 = vmatpush2.msra.mxu0 0.0
          %444 = vmatprep.subr.mxu0 0.0
          %445 = vmatpush2.msra.mxu0 0.0
          %446 = vmatprep.subr.mxu0 0.0
          %447 = vmatpush2.msra.mxu0 0.0
          %448 = vmatprep.subr.mxu0 0.0
          %449 = vmatpush2.msra.mxu0 0.0
          %450 = vmatprep.subr.mxu0 0.0
          %451 = vmatpush2.msra.mxu0 0.0
          %452 = vmatprep.subr.mxu0 0.0
          %453 = vmatpush2.msra.mxu0 0.0
          %454 = vmatprep.subr.mxu0 0.0
          %455 = vmatpush2.msra.mxu0 0.0
          %456 = vmatprep.subr.mxu0 0.0
          %457 = vmatpush2.msra.mxu0 0.0
          %458 = vmatprep.subr.mxu0 0.0
          %459 = vmatpush2.msra.mxu0 0.0
          %460 = vmatprep.subr.mxu0 0.0
          %461 = vmatpush2.msra.mxu0 0.0
          %462 = vmatprep.subr.mxu0 0.0
          %463 = vmatpush2.msra.mxu0 0.0
          %464 = vmatprep.subr.mxu0 0.0
          %465 = vmatpush2.msra.mxu0 0.0
          %466 = vmatprep.subr.mxu0 0.0
          %467 = vmatpush2.msra.mxu0 0.0
          %468 = vmatprep.mubr.f32.mxu0 0.0
          %v469 = vand.u32 %v248, 4294901760
          %v470 = vsub.f32 %v248, %v469
          %471 = vmatmul.mubr.f32.gmra.mxu0 %v470
          %v472 = vpop.f32.mrf.mxu0
          %v473 = vadd.f32 %v399, %v472
          %v474 = vpop.f32.mrf.mxu0
          %475 = vdwg.mxu0
          %476 = vmatprep.subr.mxu0 0.0
          %477 = vmatpush1.msra.mxu0 0.0
          %478 = vmatprep.subr.mxu0 0.0
          %479 = vmatpush1.msra.mxu0 0.0
          %480 = vmatprep.subr.mxu0 0.0
          %481 = vmatpush1.msra.mxu0 0.0
          %482 = vmatprep.subr.mxu0 0.0
          %483 = vmatpush1.msra.mxu0 0.0
          %484 = vmatprep.subr.mxu0 0.0
          %485 = vmatpush1.msra.mxu0 0.0
          %486 = vmatprep.subr.mxu0 0.0
          %487 = vmatpush1.msra.mxu0 0.0
          %488 = vmatprep.subr.mxu0 0.0
          %489 = vmatpush1.msra.mxu0 0.0
          %490 = vmatprep.subr.mxu0 0.0
          %491 = vmatpush1.msra.mxu0 0.0
          %492 = vmatprep.subr.mxu0 0.0
          %493 = vmatpush1.msra.mxu0 0.0
          %494 = vmatprep.subr.mxu0 0.0
          %495 = vmatpush1.msra.mxu0 0.0
          %496 = vmatprep.subr.mxu0 0.0
          %497 = vmatpush1.msra.mxu0 0.0
          %498 = vmatprep.subr.mxu0 0.0
          %499 = vmatpush1.msra.mxu0 0.0
          %500 = vmatprep.subr.mxu0 0.0
          %501 = vmatpush1.msra.mxu0 0.0
          %502 = vmatprep.subr.mxu0 0.0
          %503 = vmatpush1.msra.mxu0 0.0
          %504 = vmatprep.subr.mxu0 0.0
          %505 = vmatpush1.msra.mxu0 0.0
          %506 = vmatprep.subr.mxu0 0.0
          %v507 = vand.u32 %v245, 4294901760
          %508 = vmatpush1.msra.mxu0 %v507
          %509 = vmatprep.subr.mxu0 0.0
          %510 = vmatpush2.msra.mxu0 0.0
          %511 = vmatprep.subr.mxu0 0.0
          %512 = vmatpush2.msra.mxu0 0.0
          %513 = vmatprep.subr.mxu0 0.0
          %514 = vmatpush2.msra.mxu0 0.0
          %515 = vmatprep.subr.mxu0 0.0
          %516 = vmatpush2.msra.mxu0 0.0
          %517 = vmatprep.subr.mxu0 0.0
          %518 = vmatpush2.msra.mxu0 0.0
          %519 = vmatprep.subr.mxu0 0.0
          %520 = vmatpush2.msra.mxu0 0.0
          %521 = vmatprep.subr.mxu0 0.0
          %522 = vmatpush2.msra.mxu0 0.0
          %523 = vmatprep.subr.mxu0 0.0
          %524 = vmatpush2.msra.mxu0 0.0
          %525 = vmatprep.subr.mxu0 0.0
          %526 = vmatpush2.msra.mxu0 0.0
          %527 = vmatprep.subr.mxu0 0.0
          %528 = vmatpush2.msra.mxu0 0.0
          %529 = vmatprep.subr.mxu0 0.0
          %530 = vmatpush2.msra.mxu0 0.0
          %531 = vmatprep.subr.mxu0 0.0
          %532 = vmatpush2.msra.mxu0 0.0
          %533 = vmatprep.subr.mxu0 0.0
          %534 = vmatpush2.msra.mxu0 0.0
          %535 = vmatprep.subr.mxu0 0.0
          %536 = vmatpush2.msra.mxu0 0.0
          %537 = vmatprep.subr.mxu0 0.0
          %538 = vmatpush2.msra.mxu0 0.0
          %539 = vmatprep.subr.mxu0 0.0
          %540 = vmatpush2.msra.mxu0 0.0
          %541 = vmatprep.mubr.f32.mxu0 0.0
          %v542 = vand.u32 %v248, 4294901760
          %v543 = vsub.f32 %v248, %v542
          %v544 = vand.u32 %v543, 4294901760
          %545 = vmatmul.mubr.f32.gmra.mxu0 %v544
          %v546 = vpop.f32.mrf.mxu0
          %v547 = vadd.f32 %v473, %v546
          %v548 = vpop.f32.mrf.mxu0
          %549 = vdwg.mxu0
          %550 = vmatprep.subr.mxu0 0.0
          %551 = vmatpush1.msra.mxu0 0.0
          %552 = vmatprep.subr.mxu0 0.0
          %553 = vmatpush1.msra.mxu0 0.0
          %554 = vmatprep.subr.mxu0 0.0
          %555 = vmatpush1.msra.mxu0 0.0
          %556 = vmatprep.subr.mxu0 0.0
          %557 = vmatpush1.msra.mxu0 0.0
          %558 = vmatprep.subr.mxu0 0.0
          %559 = vmatpush1.msra.mxu0 0.0
          %560 = vmatprep.subr.mxu0 0.0
          %561 = vmatpush1.msra.mxu0 0.0
          %562 = vmatprep.subr.mxu0 0.0
          %563 = vmatpush1.msra.mxu0 0.0
          %564 = vmatprep.subr.mxu0 0.0
          %565 = vmatpush1.msra.mxu0 0.0
          %566 = vmatprep.subr.mxu0 0.0
          %567 = vmatpush1.msra.mxu0 0.0
          %568 = vmatprep.subr.mxu0 0.0
          %569 = vmatpush1.msra.mxu0 0.0
          %570 = vmatprep.subr.mxu0 0.0
          %571 = vmatpush1.msra.mxu0 0.0
          %572 = vmatprep.subr.mxu0 0.0
          %573 = vmatpush1.msra.mxu0 0.0
          %574 = vmatprep.subr.mxu0 0.0
          %575 = vmatpush1.msra.mxu0 0.0
          %576 = vmatprep.subr.mxu0 0.0
          %577 = vmatpush1.msra.mxu0 0.0
          %578 = vmatprep.subr.mxu0 0.0
          %579 = vmatpush1.msra.mxu0 0.0
          %580 = vmatprep.subr.mxu0 0.0
          %v581 = vand.u32 %v245, 4294901760
          %v582 = vsub.f32 %v245, %v581
          %v583 = vand.u32 %v582, 4294901760
          %584 = vmatpush1.msra.mxu0 %v583
          %585 = vmatprep.subr.mxu0 0.0
          %586 = vmatpush2.msra.mxu0 0.0
          %587 = vmatprep.subr.mxu0 0.0
          %588 = vmatpush2.msra.mxu0 0.0
          %589 = vmatprep.subr.mxu0 0.0
          %590 = vmatpush2.msra.mxu0 0.0
          %591 = vmatprep.subr.mxu0 0.0
          %592 = vmatpush2.msra.mxu0 0.0
          %593 = vmatprep.subr.mxu0 0.0
          %594 = vmatpush2.msra.mxu0 0.0
          %595 = vmatprep.subr.mxu0 0.0
          %596 = vmatpush2.msra.mxu0 0.0
          %597 = vmatprep.subr.mxu0 0.0
          %598 = vmatpush2.msra.mxu0 0.0
          %599 = vmatprep.subr.mxu0 0.0
          %600 = vmatpush2.msra.mxu0 0.0
          %601 = vmatprep.subr.mxu0 0.0
          %602 = vmatpush2.msra.mxu0 0.0
          %603 = vmatprep.subr.mxu0 0.0
          %604 = vmatpush2.msra.mxu0 0.0
          %605 = vmatprep.subr.mxu0 0.0
          %606 = vmatpush2.msra.mxu0 0.0
          %607 = vmatprep.subr.mxu0 0.0
          %608 = vmatpush2.msra.mxu0 0.0
          %609 = vmatprep.subr.mxu0 0.0
          %610 = vmatpush2.msra.mxu0 0.0
          %611 = vmatprep.subr.mxu0 0.0
          %612 = vmatpush2.msra.mxu0 0.0
          %613 = vmatprep.subr.mxu0 0.0
          %614 = vmatpush2.msra.mxu0 0.0
          %615 = vmatprep.subr.mxu0 0.0
          %616 = vmatpush2.msra.mxu0 0.0
          %617 = vmatprep.mubr.f32.mxu0 0.0
          %v618 = vand.u32 %v248, 4294901760
          %619 = vmatmul.mubr.f32.gmra.mxu0 %v618
          %v620 = vpop.f32.mrf.mxu0
          %v621 = vadd.f32 %v547, %v620
          %v622 = vpop.f32.mrf.mxu0
          %623 = vdwg.mxu0
          %624 = vmatprep.subr.mxu0 0.0
          %625 = vmatpush1.msra.mxu0 0.0
          %626 = vmatprep.subr.mxu0 0.0
          %627 = vmatpush1.msra.mxu0 0.0
          %628 = vmatprep.subr.mxu0 0.0
          %629 = vmatpush1.msra.mxu0 0.0
          %630 = vmatprep.subr.mxu0 0.0
          %631 = vmatpush1.msra.mxu0 0.0
          %632 = vmatprep.subr.mxu0 0.0
          %633 = vmatpush1.msra.mxu0 0.0
          %634 = vmatprep.subr.mxu0 0.0
          %635 = vmatpush1.msra.mxu0 0.0
          %636 = vmatprep.subr.mxu0 0.0
          %637 = vmatpush1.msra.mxu0 0.0
          %638 = vmatprep.subr.mxu0 0.0
          %639 = vmatpush1.msra.mxu0 0.0
          %640 = vmatprep.subr.mxu0 0.0
          %641 = vmatpush1.msra.mxu0 0.0
          %642 = vmatprep.subr.mxu0 0.0
          %643 = vmatpush1.msra.mxu0 0.0
          %644 = vmatprep.subr.mxu0 0.0
          %645 = vmatpush1.msra.mxu0 0.0
          %646 = vmatprep.subr.mxu0 0.0
          %647 = vmatpush1.msra.mxu0 0.0
          %648 = vmatprep.subr.mxu0 0.0
          %649 = vmatpush1.msra.mxu0 0.0
          %650 = vmatprep.subr.mxu0 0.0
          %651 = vmatpush1.msra.mxu0 0.0
          %652 = vmatprep.subr.mxu0 0.0
          %653 = vmatpush1.msra.mxu0 0.0
          %654 = vmatprep.subr.mxu0 0.0
          %v655 = vand.u32 %v245, 4294901760
          %656 = vmatpush1.msra.mxu0 %v655
          %657 = vmatprep.subr.mxu0 0.0
          %658 = vmatpush2.msra.mxu0 0.0
          %659 = vmatprep.subr.mxu0 0.0
          %660 = vmatpush2.msra.mxu0 0.0
          %661 = vmatprep.subr.mxu0 0.0
          %662 = vmatpush2.msra.mxu0 0.0
          %663 = vmatprep.subr.mxu0 0.0
          %664 = vmatpush2.msra.mxu0 0.0
          %665 = vmatprep.subr.mxu0 0.0
          %666 = vmatpush2.msra.mxu0 0.0
          %667 = vmatprep.subr.mxu0 0.0
          %668 = vmatpush2.msra.mxu0 0.0
          %669 = vmatprep.subr.mxu0 0.0
          %670 = vmatpush2.msra.mxu0 0.0
          %671 = vmatprep.subr.mxu0 0.0
          %672 = vmatpush2.msra.mxu0 0.0
          %673 = vmatprep.subr.mxu0 0.0
          %674 = vmatpush2.msra.mxu0 0.0
          %675 = vmatprep.subr.mxu0 0.0
          %676 = vmatpush2.msra.mxu0 0.0
          %677 = vmatprep.subr.mxu0 0.0
          %678 = vmatpush2.msra.mxu0 0.0
          %679 = vmatprep.subr.mxu0 0.0
          %680 = vmatpush2.msra.mxu0 0.0
          %681 = vmatprep.subr.mxu0 0.0
          %682 = vmatpush2.msra.mxu0 0.0
          %683 = vmatprep.subr.mxu0 0.0
          %684 = vmatpush2.msra.mxu0 0.0
          %685 = vmatprep.subr.mxu0 0.0
          %686 = vmatpush2.msra.mxu0 0.0
          %687 = vmatprep.subr.mxu0 0.0
          %688 = vmatpush2.msra.mxu0 0.0
          %689 = vmatprep.mubr.f32.mxu0 0.0
          %v690 = vand.u32 %v248, 4294901760
          %691 = vmatmul.mubr.f32.gmra.mxu0 %v690
          %v692 = vpop.f32.mrf.mxu0
          %v693 = vadd.f32 %v621, %v692
          %v694 = vpop.f32.mrf.mxu0
          %695 = vdwg.mxu0
          %v696 = vmax.f32 %v693, 0.0
          %697 = vadd.xlane.f32.xlu0 %v696
          %v698 = vpop.xlane.xlu0 %697
          %v699 = vadd.f32 %v698, 0.0
          %v700 = vmul.f32 %v696, %v696
          %701 = vadd.xlane.f32.xlu0 %v700
          %v702 = vpop.xlane.xlu0 %701
          %v703 = vadd.f32 %v702, 0.0
          %s704 = scalar_lea.vmem [#allocation2], 8
          %v705 = vld [vmem:[%s704] sm:$0xff]
          %706 = vmatprep.subr.mxu0 0.0
          %707 = vmatpush1.msra.mxu0 0.0
          %708 = vmatprep.subr.mxu0 0.0
          %709 = vmatpush1.msra.mxu0 0.0
          %710 = vmatprep.subr.mxu0 0.0
          %711 = vmatpush1.msra.mxu0 0.0
          %712 = vmatprep.subr.mxu0 0.0
          %713 = vmatpush1.msra.mxu0 0.0
          %714 = vmatprep.subr.mxu0 0.0
          %715 = vmatpush1.msra.mxu0 0.0
          %716 = vmatprep.subr.mxu0 0.0
          %717 = vmatpush1.msra.mxu0 0.0
          %718 = vmatprep.subr.mxu0 0.0
          %719 = vmatpush1.msra.mxu0 0.0
          %720 = vmatprep.subr.mxu0 0.0
          %721 = vmatpush1.msra.mxu0 0.0
          %722 = vmatprep.subr.mxu0 0.0
          %723 = vmatpush1.msra.mxu0 0.0
          %724 = vmatprep.subr.mxu0 0.0
          %725 = vmatpush1.msra.mxu0 0.0
          %726 = vmatprep.subr.mxu0 0.0
          %727 = vmatpush1.msra.mxu0 0.0
          %728 = vmatprep.subr.mxu0 0.0
          %729 = vmatpush1.msra.mxu0 0.0
          %730 = vmatprep.subr.mxu0 0.0
          %731 = vmatpush1.msra.mxu0 0.0
          %732 = vmatprep.subr.mxu0 0.0
          %733 = vmatpush1.msra.mxu0 0.0
          %734 = vmatprep.subr.mxu0 0.0
          %735 = vmatpush1.msra.mxu0 0.0
          %736 = vmatprep.subr.mxu0 0.0
          %v737 = vand.u32 %v705, 4294901760
          %738 = vmatpush1.msra.mxu0 %v737
          %739 = vmatprep.subr.mxu0 0.0
          %740 = vmatpush2.msra.mxu0 0.0
          %741 = vmatprep.subr.mxu0 0.0
          %742 = vmatpush2.msra.mxu0 0.0
          %743 = vmatprep.subr.mxu0 0.0
          %744 = vmatpush2.msra.mxu0 0.0
          %745 = vmatprep.subr.mxu0 0.0
          %746 = vmatpush2.msra.mxu0 0.0
          %747 = vmatprep.subr.mxu0 0.0
          %748 = vmatpush2.msra.mxu0 0.0
          %749 = vmatprep.subr.mxu0 0.0
          %750 = vmatpush2.msra.mxu0 0.0
          %751 = vmatprep.subr.mxu0 0.0
          %752 = vmatpush2.msra.mxu0 0.0
          %753 = vmatprep.subr.mxu0 0.0
          %754 = vmatpush2.msra.mxu0 0.0
          %755 = vmatprep.subr.mxu0 0.0
          %756 = vmatpush2.msra.mxu0 0.0
          %757 = vmatprep.subr.mxu0 0.0
          %758 = vmatpush2.msra.mxu0 0.0
          %759 = vmatprep.subr.mxu0 0.0
          %760 = vmatpush2.msra.mxu0 0.0
          %761 = vmatprep.subr.mxu0 0.0
          %762 = vmatpush2.msra.mxu0 0.0
          %763 = vmatprep.subr.mxu0 0.0
          %764 = vmatpush2.msra.mxu0 0.0
          %765 = vmatprep.subr.mxu0 0.0
          %766 = vmatpush2.msra.mxu0 0.0
          %767 = vmatprep.subr.mxu0 0.0
          %768 = vmatpush2.msra.mxu0 0.0
          %769 = vmatprep.subr.mxu0 0.0
          %770 = vmatpush2.msra.mxu0 0.0
          %771 = vmatprep.mubr.f32.mxu0 0.0
          %v772 = vand.u32 %v248, 4294901760
          %v773 = vsub.f32 %v248, %v772
          %v774 = vand.u32 %v773, 4294901760
          %v775 = vsub.f32 %v773, %v774
          %v776 = vand.u32 %v775, 4294901760
          %777 = vmatmul.mubr.f32.gmra.mxu0 %v776
          %v778 = vpop.f32.mrf.mxu0
          %v779 = vadd.f32 0.0, %v778
          %v780 = vpop.f32.mrf.mxu0
          %781 = vdwg.mxu0
          %782 = vmatprep.subr.mxu0 0.0
          %783 = vmatpush1.msra.mxu0 0.0
          %784 = vmatprep.subr.mxu0 0.0
          %785 = vmatpush1.msra.mxu0 0.0
          %786 = vmatprep.subr.mxu0 0.0
          %787 = vmatpush1.msra.mxu0 0.0
          %788 = vmatprep.subr.mxu0 0.0
          %789 = vmatpush1.msra.mxu0 0.0
          %790 = vmatprep.subr.mxu0 0.0
          %791 = vmatpush1.msra.mxu0 0.0
          %792 = vmatprep.subr.mxu0 0.0
          %793 = vmatpush1.msra.mxu0 0.0
          %794 = vmatprep.subr.mxu0 0.0
          %795 = vmatpush1.msra.mxu0 0.0
          %796 = vmatprep.subr.mxu0 0.0
          %797 = vmatpush1.msra.mxu0 0.0
          %798 = vmatprep.subr.mxu0 0.0
          %799 = vmatpush1.msra.mxu0 0.0
          %800 = vmatprep.subr.mxu0 0.0
          %801 = vmatpush1.msra.mxu0 0.0
          %802 = vmatprep.subr.mxu0 0.0
          %803 = vmatpush1.msra.mxu0 0.0
          %804 = vmatprep.subr.mxu0 0.0
          %805 = vmatpush1.msra.mxu0 0.0
          %806 = vmatprep.subr.mxu0 0.0
          %807 = vmatpush1.msra.mxu0 0.0
          %808 = vmatprep.subr.mxu0 0.0
          %809 = vmatpush1.msra.mxu0 0.0
          %810 = vmatprep.subr.mxu0 0.0
          %811 = vmatpush1.msra.mxu0 0.0
          %812 = vmatprep.subr.mxu0 0.0
          %v813 = vand.u32 %v705, 4294901760
          %v814 = vsub.f32 %v705, %v813
          %v815 = vand.u32 %v814, 4294901760
          %v816 = vsub.f32 %v814, %v815
          %v817 = vand.u32 %v816, 4294901760
          %818 = vmatpush1.msra.mxu0 %v817
          %819 = vmatprep.subr.mxu0 0.0
          %820 = vmatpush2.msra.mxu0 0.0
          %821 = vmatprep.subr.mxu0 0.0
          %822 = vmatpush2.msra.mxu0 0.0
          %823 = vmatprep.subr.mxu0 0.0
          %824 = vmatpush2.msra.mxu0 0.0
          %825 = vmatprep.subr.mxu0 0.0
          %826 = vmatpush2.msra.mxu0 0.0
          %827 = vmatprep.subr.mxu0 0.0
          %828 = vmatpush2.msra.mxu0 0.0
          %829 = vmatprep.subr.mxu0 0.0
          %830 = vmatpush2.msra.mxu0 0.0
          %831 = vmatprep.subr.mxu0 0.0
          %832 = vmatpush2.msra.mxu0 0.0
          %833 = vmatprep.subr.mxu0 0.0
          %834 = vmatpush2.msra.mxu0 0.0
          %835 = vmatprep.subr.mxu0 0.0
          %836 = vmatpush2.msra.mxu0 0.0
          %837 = vmatprep.subr.mxu0 0.0
          %838 = vmatpush2.msra.mxu0 0.0
          %839 = vmatprep.subr.mxu0 0.0
          %840 = vmatpush2.msra.mxu0 0.0
          %841 = vmatprep.subr.mxu0 0.0
          %842 = vmatpush2.msra.mxu0 0.0
          %843 = vmatprep.subr.mxu0 0.0
          %844 = vmatpush2.msra.mxu0 0.0
          %845 = vmatprep.subr.mxu0 0.0
          %846 = vmatpush2.msra.mxu0 0.0
          %847 = vmatprep.subr.mxu0 0.0
          %848 = vmatpush2.msra.mxu0 0.0
          %849 = vmatprep.subr.mxu0 0.0
          %850 = vmatpush2.msra.mxu0 0.0
          %851 = vmatprep.mubr.f32.mxu0 0.0
          %v852 = vand.u32 %v248, 4294901760
          %853 = vmatmul.mubr.f32.gmra.mxu0 %v852
          %v854 = vpop.f32.mrf.mxu0
          %v855 = vadd.f32 %v779, %v854
          %v856 = vpop.f32.mrf.mxu0
          %857 = vdwg.mxu0
          %858 = vmatprep.subr.mxu0 0.0
          %859 = vmatpush1.msra.mxu0 0.0
          %860 = vmatprep.subr.mxu0 0.0
          %861 = vmatpush1.msra.mxu0 0.0
          %862 = vmatprep.subr.mxu0 0.0
          %863 = vmatpush1.msra.mxu0 0.0
          %864 = vmatprep.subr.mxu0 0.0
          %865 = vmatpush1.msra.mxu0 0.0
          %866 = vmatprep.subr.mxu0 0.0
          %867 = vmatpush1.msra.mxu0 0.0
          %868 = vmatprep.subr.mxu0 0.0
          %869 = vmatpush1.msra.mxu0 0.0
          %870 = vmatprep.subr.mxu0 0.0
          %871 = vmatpush1.msra.mxu0 0.0
          %872 = vmatprep.subr.mxu0 0.0
          %873 = vmatpush1.msra.mxu0 0.0
          %874 = vmatprep.subr.mxu0 0.0
          %875 = vmatpush1.msra.mxu0 0.0
          %876 = vmatprep.subr.mxu0 0.0
          %877 = vmatpush1.msra.mxu0 0.0
          %878 = vmatprep.subr.mxu0 0.0
          %879 = vmatpush1.msra.mxu0 0.0
          %880 = vmatprep.subr.mxu0 0.0
          %881 = vmatpush1.msra.mxu0 0.0
          %882 = vmatprep.subr.mxu0 0.0
          %883 = vmatpush1.msra.mxu0 0.0
          %884 = vmatprep.subr.mxu0 0.0
          %885 = vmatpush1.msra.mxu0 0.0
          %886 = vmatprep.subr.mxu0 0.0
          %887 = vmatpush1.msra.mxu0 0.0
          %888 = vmatprep.subr.mxu0 0.0
          %v889 = vand.u32 %v705, 4294901760
          %v890 = vsub.f32 %v705, %v889
          %891 = vmatpush1.msra.mxu0 %v890
          %892 = vmatprep.subr.mxu0 0.0
          %893 = vmatpush2.msra.mxu0 0.0
          %894 = vmatprep.subr.mxu0 0.0
          %895 = vmatpush2.msra.mxu0 0.0
          %896 = vmatprep.subr.mxu0 0.0
          %897 = vmatpush2.msra.mxu0 0.0
          %898 = vmatprep.subr.mxu0 0.0
          %899 = vmatpush2.msra.mxu0 0.0
          %900 = vmatprep.subr.mxu0 0.0
          %901 = vmatpush2.msra.mxu0 0.0
          %902 = vmatprep.subr.mxu0 0.0
          %903 = vmatpush2.msra.mxu0 0.0
          %904 = vmatprep.subr.mxu0 0.0
          %905 = vmatpush2.msra.mxu0 0.0
          %906 = vmatprep.subr.mxu0 0.0
          %907 = vmatpush2.msra.mxu0 0.0
          %908 = vmatprep.subr.mxu0 0.0
          %909 = vmatpush2.msra.mxu0 0.0
          %910 = vmatprep.subr.mxu0 0.0
          %911 = vmatpush2.msra.mxu0 0.0
          %912 = vmatprep.subr.mxu0 0.0
          %913 = vmatpush2.msra.mxu0 0.0
          %914 = vmatprep.subr.mxu0 0.0
          %915 = vmatpush2.msra.mxu0 0.0
          %916 = vmatprep.subr.mxu0 0.0
          %917 = vmatpush2.msra.mxu0 0.0
          %918 = vmatprep.subr.mxu0 0.0
          %919 = vmatpush2.msra.mxu0 0.0
          %920 = vmatprep.subr.mxu0 0.0
          %921 = vmatpush2.msra.mxu0 0.0
          %922 = vmatprep.subr.mxu0 0.0
          %923 = vmatpush2.msra.mxu0 0.0
          %924 = vmatprep.mubr.f32.mxu0 0.0
          %v925 = vand.u32 %v248, 4294901760
          %v926 = vsub.f32 %v248, %v925
          %927 = vmatmul.mubr.f32.gmra.mxu0 %v926
          %v928 = vpop.f32.mrf.mxu0
          %v929 = vadd.f32 %v855, %v928
          %v930 = vpop.f32.mrf.mxu0
          %931 = vdwg.mxu0
          %932 = vmatprep.subr.mxu0 0.0
          %933 = vmatpush1.msra.mxu0 0.0
          %934 = vmatprep.subr.mxu0 0.0
          %935 = vmatpush1.msra.mxu0 0.0
          %936 = vmatprep.subr.mxu0 0.0
          %937 = vmatpush1.msra.mxu0 0.0
          %938 = vmatprep.subr.mxu0 0.0
          %939 = vmatpush1.msra.mxu0 0.0
          %940 = vmatprep.subr.mxu0 0.0
          %941 = vmatpush1.msra.mxu0 0.0
          %942 = vmatprep.subr.mxu0 0.0
          %943 = vmatpush1.msra.mxu0 0.0
          %944 = vmatprep.subr.mxu0 0.0
          %945 = vmatpush1.msra.mxu0 0.0
          %946 = vmatprep.subr.mxu0 0.0
          %947 = vmatpush1.msra.mxu0 0.0
          %948 = vmatprep.subr.mxu0 0.0
          %949 = vmatpush1.msra.mxu0 0.0
          %950 = vmatprep.subr.mxu0 0.0
          %951 = vmatpush1.msra.mxu0 0.0
          %952 = vmatprep.subr.mxu0 0.0
          %953 = vmatpush1.msra.mxu0 0.0
          %954 = vmatprep.subr.mxu0 0.0
          %955 = vmatpush1.msra.mxu0 0.0
          %956 = vmatprep.subr.mxu0 0.0
          %957 = vmatpush1.msra.mxu0 0.0
          %958 = vmatprep.subr.mxu0 0.0
          %959 = vmatpush1.msra.mxu0 0.0
          %960 = vmatprep.subr.mxu0 0.0
          %961 = vmatpush1.msra.mxu0 0.0
          %962 = vmatprep.subr.mxu0 0.0
          %v963 = vand.u32 %v705, 4294901760
          %964 = vmatpush1.msra.mxu0 %v963
          %965 = vmatprep.subr.mxu0 0.0
          %966 = vmatpush2.msra.mxu0 0.0
          %967 = vmatprep.subr.mxu0 0.0
          %968 = vmatpush2.msra.mxu0 0.0
          %969 = vmatprep.subr.mxu0 0.0
          %970 = vmatpush2.msra.mxu0 0.0
          %971 = vmatprep.subr.mxu0 0.0
          %972 = vmatpush2.msra.mxu0 0.0
          %973 = vmatprep.subr.mxu0 0.0
          %974 = vmatpush2.msra.mxu0 0.0
          %975 = vmatprep.subr.mxu0 0.0
          %976 = vmatpush2.msra.mxu0 0.0
          %977 = vmatprep.subr.mxu0 0.0
          %978 = vmatpush2.msra.mxu0 0.0
          %979 = vmatprep.subr.mxu0 0.0
          %980 = vmatpush2.msra.mxu0 0.0
          %981 = vmatprep.subr.mxu0 0.0
          %982 = vmatpush2.msra.mxu0 0.0
          %983 = vmatprep.subr.mxu0 0.0
          %984 = vmatpush2.msra.mxu0 0.0
          %985 = vmatprep.subr.mxu0 0.0
          %986 = vmatpush2.msra.mxu0 0.0
          %987 = vmatprep.subr.mxu0 0.0
          %988 = vmatpush2.msra.mxu0 0.0
          %989 = vmatprep.subr.mxu0 0.0
          %990 = vmatpush2.msra.mxu0 0.0
          %991 = vmatprep.subr.mxu0 0.0
          %992 = vmatpush2.msra.mxu0 0.0
          %993 = vmatprep.subr.mxu0 0.0
          %994 = vmatpush2.msra.mxu0 0.0
          %995 = vmatprep.subr.mxu0 0.0
          %996 = vmatpush2.msra.mxu0 0.0
          %997 = vmatprep.mubr.f32.mxu0 0.0
          %v998 = vand.u32 %v248, 4294901760
          %v999 = vsub.f32 %v248, %v998
          %v1000 = vand.u32 %v999, 4294901760
          %1001 = vmatmul.mubr.f32.gmra.mxu0 %v1000
          %v1002 = vpop.f32.mrf.mxu0
          %v1003 = vadd.f32 %v929, %v1002
          %v1004 = vpop.f32.mrf.mxu0
          %1005 = vdwg.mxu0
          %1006 = vmatprep.subr.mxu0 0.0
          %1007 = vmatpush1.msra.mxu0 0.0
          %1008 = vmatprep.subr.mxu0 0.0
          %1009 = vmatpush1.msra.mxu0 0.0
          %1010 = vmatprep.subr.mxu0 0.0
          %1011 = vmatpush1.msra.mxu0 0.0
          %1012 = vmatprep.subr.mxu0 0.0
          %1013 = vmatpush1.msra.mxu0 0.0
          %1014 = vmatprep.subr.mxu0 0.0
          %1015 = vmatpush1.msra.mxu0 0.0
          %1016 = vmatprep.subr.mxu0 0.0
          %1017 = vmatpush1.msra.mxu0 0.0
          %1018 = vmatprep.subr.mxu0 0.0
          %1019 = vmatpush1.msra.mxu0 0.0
          %1020 = vmatprep.subr.mxu0 0.0
          %1021 = vmatpush1.msra.mxu0 0.0
          %1022 = vmatprep.subr.mxu0 0.0
          %1023 = vmatpush1.msra.mxu0 0.0
          %1024 = vmatprep.subr.mxu0 0.0
          %1025 = vmatpush1.msra.mxu0 0.0
          %1026 = vmatprep.subr.mxu0 0.0
          %1027 = vmatpush1.msra.mxu0 0.0
          %1028 = vmatprep.subr.mxu0 0.0
          %1029 = vmatpush1.msra.mxu0 0.0
          %1030 = vmatprep.subr.mxu0 0.0
          %1031 = vmatpush1.msra.mxu0 0.0
          %1032 = vmatprep.subr.mxu0 0.0
          %1033 = vmatpush1.msra.mxu0 0.0
          %1034 = vmatprep.subr.mxu0 0.0
          %1035 = vmatpush1.msra.mxu0 0.0
          %1036 = vmatprep.subr.mxu0 0.0
          %v1037 = vand.u32 %v705, 4294901760
          %v1038 = vsub.f32 %v705, %v1037
          %v1039 = vand.u32 %v1038, 4294901760
          %1040 = vmatpush1.msra.mxu0 %v1039
          %1041 = vmatprep.subr.mxu0 0.0
          %1042 = vmatpush2.msra.mxu0 0.0
          %1043 = vmatprep.subr.mxu0 0.0
          %1044 = vmatpush2.msra.mxu0 0.0
          %1045 = vmatprep.subr.mxu0 0.0
          %1046 = vmatpush2.msra.mxu0 0.0
          %1047 = vmatprep.subr.mxu0 0.0
          %1048 = vmatpush2.msra.mxu0 0.0
          %1049 = vmatprep.subr.mxu0 0.0
          %1050 = vmatpush2.msra.mxu0 0.0
          %1051 = vmatprep.subr.mxu0 0.0
          %1052 = vmatpush2.msra.mxu0 0.0
          %1053 = vmatprep.subr.mxu0 0.0
          %1054 = vmatpush2.msra.mxu0 0.0
          %1055 = vmatprep.subr.mxu0 0.0
          %1056 = vmatpush2.msra.mxu0 0.0
          %1057 = vmatprep.subr.mxu0 0.0
          %1058 = vmatpush2.msra.mxu0 0.0
          %1059 = vmatprep.subr.mxu0 0.0
          %1060 = vmatpush2.msra.mxu0 0.0
          %1061 = vmatprep.subr.mxu0 0.0
          %1062 = vmatpush2.msra.mxu0 0.0
          %1063 = vmatprep.subr.mxu0 0.0
          %1064 = vmatpush2.msra.mxu0 0.0
          %1065 = vmatprep.subr.mxu0 0.0
          %1066 = vmatpush2.msra.mxu0 0.0
          %1067 = vmatprep.subr.mxu0 0.0
          %1068 = vmatpush2.msra.mxu0 0.0
          %1069 = vmatprep.subr.mxu0 0.0
          %1070 = vmatpush2.msra.mxu0 0.0
          %1071 = vmatprep.subr.mxu0 0.0
          %1072 = vmatpush2.msra.mxu0 0.0
          %1073 = vmatprep.mubr.f32.mxu0 0.0
          %v1074 = vand.u32 %v248, 4294901760
          %1075 = vmatmul.mubr.f32.gmra.mxu0 %v1074
          %v1076 = vpop.f32.mrf.mxu0
          %v1077 = vadd.f32 %v1003, %v1076
          %v1078 = vpop.f32.mrf.mxu0
          %1079 = vdwg.mxu0
          %1080 = vmatprep.subr.mxu0 0.0
          %1081 = vmatpush1.msra.mxu0 0.0
          %1082 = vmatprep.subr.mxu0 0.0
          %1083 = vmatpush1.msra.mxu0 0.0
          %1084 = vmatprep.subr.mxu0 0.0
          %1085 = vmatpush1.msra.mxu0 0.0
          %1086 = vmatprep.subr.mxu0 0.0
          %1087 = vmatpush1.msra.mxu0 0.0
          %1088 = vmatprep.subr.mxu0 0.0
          %1089 = vmatpush1.msra.mxu0 0.0
          %1090 = vmatprep.subr.mxu0 0.0
          %1091 = vmatpush1.msra.mxu0 0.0
          %1092 = vmatprep.subr.mxu0 0.0
          %1093 = vmatpush1.msra.mxu0 0.0
          %1094 = vmatprep.subr.mxu0 0.0
          %1095 = vmatpush1.msra.mxu0 0.0
          %1096 = vmatprep.subr.mxu0 0.0
          %1097 = vmatpush1.msra.mxu0 0.0
          %1098 = vmatprep.subr.mxu0 0.0
          %1099 = vmatpush1.msra.mxu0 0.0
          %1100 = vmatprep.subr.mxu0 0.0
          %1101 = vmatpush1.msra.mxu0 0.0
          %1102 = vmatprep.subr.mxu0 0.0
          %1103 = vmatpush1.msra.mxu0 0.0
          %1104 = vmatprep.subr.mxu0 0.0
          %1105 = vmatpush1.msra.mxu0 0.0
          %1106 = vmatprep.subr.mxu0 0.0
          %1107 = vmatpush1.msra.mxu0 0.0
          %1108 = vmatprep.subr.mxu0 0.0
          %1109 = vmatpush1.msra.mxu0 0.0
          %1110 = vmatprep.subr.mxu0 0.0
          %v1111 = vand.u32 %v705, 4294901760
          %1112 = vmatpush1.msra.mxu0 %v1111
          %1113 = vmatprep.subr.mxu0 0.0
          %1114 = vmatpush2.msra.mxu0 0.0
          %1115 = vmatprep.subr.mxu0 0.0
          %1116 = vmatpush2.msra.mxu0 0.0
          %1117 = vmatprep.subr.mxu0 0.0
          %1118 = vmatpush2.msra.mxu0 0.0
          %1119 = vmatprep.subr.mxu0 0.0
          %1120 = vmatpush2.msra.mxu0 0.0
          %1121 = vmatprep.subr.mxu0 0.0
          %1122 = vmatpush2.msra.mxu0 0.0
          %1123 = vmatprep.subr.mxu0 0.0
          %1124 = vmatpush2.msra.mxu0 0.0
          %1125 = vmatprep.subr.mxu0 0.0
          %1126 = vmatpush2.msra.mxu0 0.0
          %1127 = vmatprep.subr.mxu0 0.0
          %1128 = vmatpush2.msra.mxu0 0.0
          %1129 = vmatprep.subr.mxu0 0.0
          %1130 = vmatpush2.msra.mxu0 0.0
          %1131 = vmatprep.subr.mxu0 0.0
          %1132 = vmatpush2.msra.mxu0 0.0
          %1133 = vmatprep.subr.mxu0 0.0
          %1134 = vmatpush2.msra.mxu0 0.0
          %1135 = vmatprep.subr.mxu0 0.0
          %1136 = vmatpush2.msra.mxu0 0.0
          %1137 = vmatprep.subr.mxu0 0.0
          %1138 = vmatpush2.msra.mxu0 0.0
          %1139 = vmatprep.subr.mxu0 0.0
          %1140 = vmatpush2.msra.mxu0 0.0
          %1141 = vmatprep.subr.mxu0 0.0
          %1142 = vmatpush2.msra.mxu0 0.0
          %1143 = vmatprep.subr.mxu0 0.0
          %1144 = vmatpush2.msra.mxu0 0.0
          %1145 = vmatprep.mubr.f32.mxu0 0.0
          %v1146 = vand.u32 %v248, 4294901760
          %1147 = vmatmul.mubr.f32.gmra.mxu0 %v1146
          %v1148 = vpop.f32.mrf.mxu0
          %v1149 = vadd.f32 %v1077, %v1148
          %v1150 = vpop.f32.mrf.mxu0
          %1151 = vdwg.mxu0
          %v1152 = vmax.f32 %v1149, 0.0
          %1153 = vadd.xlane.f32.xlu0 %v1152
          %v1154 = vpop.xlane.xlu0 %1153
          %v1155 = vadd.f32 %v699, %v1154
          %v1156 = vmul.f32 %v1152, %v1152
          %1157 = vadd.xlane.f32.xlu0 %v1156
          %v1158 = vpop.xlane.xlu0 %1157
          %v1159 = vadd.f32 %v703, %v1158
          %v1160 = vmul.f32 %v1155, 0.00390625
          %v1161 = vmul.f32 %v1159, 0.00390625
          %v1162 = vmul.f32 %v1160, %v1160
          %v1163 = vsub.f32 %v1161, %v1162
          %v1164 = vmax.f32 %v1163, 0.0
          %v1165 = vadd.f32 %v1164, 1e-05
          %v1166 = vrsqrt.pop %v1165
          %s1167 = scalar_lea.vmem %s2, %s242
          %v1168 = vld [vmem:[%s1167] sm:$0xff]
          %v1169 = vmul.f32 %v1166, %v1168
          %s1170 = scalar_lea.vmem %s3, %s242
          %v1171 = vld [vmem:[%s1170] sm:$0xff]
          %v1172 = vmul.f32 %v1160, %v1169
          %v1173 = vsub.f32 %v1171, %v1172
          %1175 = vset.pattern.permute.xlu0 0
          %1176 = vperm.xlu0 %1175, %v1169
          %v1177 = vpop.permute.xlu0 %1176
          %v1179 = vmul.f32 %v696, %v1177
          %1181 = vset.pattern.permute.xlu0 0
          %1182 = vperm.xlu0 %1181, %v1173
          %v1183 = vpop.permute.xlu0 %1182
          %v1185 = vadd.f32 %v1179, %v1183
          %v1186 = vmul.f32 %v1152, %v1177
          %v1187 = vadd.f32 %v1186, %v1183
          %1188 = vst [vmem:[%s214] sm:$0xff] %v1185
          %s1189 = scalar_lea.vmem %s214, 8 [#allocation6]
          %1190 = vst [vmem:[%s1189] sm:$0xff] %v1187
          %s1191 = sadd.s32 %s21, 1
          %p1192 = scmp.lt.s32.totalorder %s1191, 3
          // Predicated region
          $region53: #{tpu_custom_call.1} parent=51 // pred_check
            %p1193 = pneg %p1192
          $region54: #{tpu_custom_call.1} parent=51 // pred_check_branch
            %1195 = sbr.rel (%p1193) target = $region56
          $region55: #{tpu_custom_call.1} parent=51 // pred_region
            %1196 = vst [vmem:[#allocation2] sm:$0xff] %v1185
            %1197 = vst [vmem:[%s704] sm:$0xff] %v1187
          $region56: #{tpu_custom_call.1} parent=51 // pred_fallthru
            _
        $region52: #{tpu_custom_call.1} parent=35 // pred_fallthru
          _
        %p1198 = scmp.ge.s32.totalorder %s21, 3
        // Predicated region
        $region57: #{tpu_custom_call.1} parent=35 // pred_check
          %p1199 = pneg %p1198
        $region58: #{tpu_custom_call.1} parent=35 // pred_check_branch
          %1201 = sbr.rel (%p1199) target = $region60
        $region59: #{tpu_custom_call.1} parent=35 // pred_region
          %v1202 = vld [vmem:[%s190] sm:$0xff]
          %v1203 = vld [vmem:[%s190 + $0x8] sm:$0xff]
          %1204 = vst [vmem:[%s214] sm:$0xff] %v1202
          %1205 = vst [vmem:[%s214 + $0x8] sm:$0xff] %v1203
        $region60: #{tpu_custom_call.1} parent=35 // pred_fallthru
          _
        %s1206 = sand.u32 %s118, 1
        %s1207 = scalar_lea.sflag [#allocation5], %s1206
        %s1208 = sand.u32 %s118, 1
        %s1209 = smul.addr %s1208, 16
        %s1210 = scalar_lea.vmem [#allocation6], %s1209
        // Predicated region
        $region61: #{tpu_custom_call.1} parent=35 // pred_check
          %p1211 = pneg %p128
        $region62: #{tpu_custom_call.1} parent=35 // pred_check_branch
          %1213 = sbr.rel (%p1211) target = $region64
        $region63: #{tpu_custom_call.1} parent=35 // pred_region
          %s1215 = ssub.s32 256, 256
          %1216 = vsyncadd %s1207, %s1215
          %s1217 = smul.addr %s21, 128
          %s1218 = scalar_lea.hbm %s4, %s1217
          %s1219 = sshll.u32 %s1210, 4
          %s1220 = int_to_ptr.vmem [resolvable:$true] %s1219
          %1225 = dma.vmem_to_hbm [thread:$0]  %s1220, 256, %s1218, %s1207, 128, 512, 8
        $region64: #{tpu_custom_call.1} parent=35 // pred_fallthru
          _
      $region36: #{tpu_custom_call.1} parent=5 // pred_fallthru
        _
      %p1226 = scmp.le.s32.totalorder 2, %s16
      // Predicated region
      $region65: #{tpu_custom_call.1} parent=5 // pred_check
        %p1227 = pneg %p1226
      $region66: #{tpu_custom_call.1} parent=5 // pred_check_branch
        %1229 = sbr.rel (%p1227) target = $region68
      $region67: #{tpu_custom_call.1} parent=5 // pred_region
        %s1230 = ssub.s32 %s16, 2
        // Predicated region
        $region69: #{tpu_custom_call.1} parent=67 // pred_check
          %p1231 = pneg %p134
        $region70: #{tpu_custom_call.1} parent=67 // pred_check_branch
          %1233 = sbr.rel (%p1231) target = $region72
        $region71: #{tpu_custom_call.1} parent=67 // pred_region
          %s1234 = sand.u32 %s119, 1
          %s1235 = scalar_lea.sflag [#allocation5], %s1234
          %s1236 = sand.u32 %s119, 1
          %s1237 = smul.addr %s1236, 16
          %s1238 = scalar_lea.vmem [#allocation6], %s1237
          %1239 = dma.done %s1235, 256
        $region72: #{tpu_custom_call.1} parent=67 // pred_fallthru
          _
      $region68: #{tpu_custom_call.1} parent=5 // pred_fallthru
        _
    $region6: #{tpu_custom_call.1} parent=1 // loop_footer
      %s20 = sadd.s32 1, %s16
    $region7: #{tpu_custom_call.1} parent=1 // loop_footer_branch
      %15 = sbr.rel target = $region3
    $region8: #{tpu_custom_call.1} parent=1 // loop_exit
      _
    %1240 = vsyncpa [#allocation4], 1
    %s1241 = scalar_lea.sflag [#allocation4], 1
    %1242 = vsyncpa %s1241, 1
    %1243 = vsyncpa [#allocation5], 1
    %s1244 = scalar_lea.sflag [#allocation5], 1
    %1245 = vsyncpa %s1244, 1

</llo_original>
